<compile_context>
chip_gen: v6e
topology: v6e:2x2x1
jax: 0.10.0
libtpu: 0.0.40
codegen_flags: <defaults>
</compile_context>

<pallas_src>
import jax
import jax.numpy as jnp
import numpy as np
from jax import lax
from jax.experimental import pallas as pl
from jax.experimental.pallas import tpu as pltpu

# ----------------------------- configuration --------------------------------
B, C_IN, H, W = 2, 4, 16, 16          # input  [B, C, H, W]  (NCHW)
C_OUT = 8                              # conv output channels
EMBED_DIM = 32                         # embedding dim
NUM_CLASSES = 16                       # head classes
SCALE = 16.0                           # cosface scale
MARGIN = 0.2                           # cosface margin
HW = H * W                             # 256
BHW = B * HW                           # 512 (lane-dense: 4 * 128)
N_TAPS = 9

# packed-parameter slab layout ([W_ROWS, 128] f32 -> one DMA)
R_WCONV = 0                            # 9 taps x 8 rows, cols 0:C_IN
R_WPROJ = 72                           # 8 rows,  cols 0:EMBED_DIM
R_BCONV = 80                           # 8 rows,  col 0
R_BPROJ = 88                           # 1 row,   cols 0:EMBED_DIM
R_WHEAD = 96                           # 32 rows, cols 0:NUM_CLASSES (pre-normalized)
W_ROWS = 128

# constants slab layout ([C_ROWS, BHW] f32 -> one DMA)
R_POOL = N_TAPS                        # rows 0..8: tap masks, rows 9..9+B: pooling
C_ROWS = N_TAPS + B


# --------------------------- fused forward kernel ---------------------------
def fused_kernel(tgt_ref,              # [B] int32 (SMEM, scalar prefetch)
                 x_ref,                # [B*C_IN, HW]   f32 (free reshape of NCHW)
                 c_ref,                # [C_ROWS, BHW]  f32 (tap masks + pool rows)
                 w_ref,                # [W_ROWS, 128]  f32 (all weights, packed)
                 logits_ref):          # [B, NUM_CLASSES] f32
    # ---- rearrange to lane-dense [C_IN, B*HW]: both batches share the lane axis
    xc = jnp.concatenate(
        [x_ref[b * C_IN:(b + 1) * C_IN, :] for b in range(B)], axis=1)

    # ---- conv3x3 (pad=1): 9 shifted taps via pltpu.roll (XLU) + constant 0/1
    #      boundary masks, accumulated as 9 [C_OUT,C_IN]@[C_IN,BHW] MXU matmuls.
    #      Conv bias folded into the accumulator init.
    acc = jnp.broadcast_to(w_ref[R_BCONV:R_BCONV + C_OUT, 0:1], (C_OUT, BHW))
    for t in range(N_TAPS):
        dy, dx = t // 3 - 1, t % 3 - 1
        s = dy * W + dx                                  # lane shift for this tap
        if s == 0:
            xs = xc                                      # center tap: no roll/mask
        else:
            xs = pltpu.roll(xc, shift=(-s) % BHW, axis=1) * c_ref[t:t + 1, :]
        w_t = w_ref[R_WCONV + 8 * t:R_WCONV + 8 * t + C_OUT, 0:C_IN]  # [C_OUT,C_IN]
        acc = acc + jnp.dot(w_t, xs, preferred_element_type=jnp.float32)
    act = jnp.maximum(acc, 0.0)                          # ReLU, [C_OUT, BHW] f32

    # ---- global average pool per batch element via MXU with constant pool rows
    pool = c_ref[R_POOL:R_POOL + B, :]                   # [B, BHW]
    pooled = lax.dot_general(pool, act, (((1,), (1,)), ((), ())),
                             preferred_element_type=jnp.float32)      # [B, C_OUT]

    # ---- embedding projection (Linear), f32 end-to-end
    emb = jnp.dot(pooled, w_ref[R_WPROJ:R_WPROJ + C_OUT, 0:EMBED_DIM],
                  preferred_element_type=jnp.float32)
    emb = emb + w_ref[R_BPROJ:R_BPROJ + 1, 0:EMBED_DIM]               # [B, EMBED]

    # ---- cosface head (whead pre-normalized at pack time)
    emb_n = emb * lax.rsqrt(jnp.sum(emb * emb, axis=1, keepdims=True) + 1e-12)
    cos = jnp.dot(emb_n, w_ref[R_WHEAD:R_WHEAD + EMBED_DIM, 0:NUM_CLASSES],
                  preferred_element_type=jnp.float32)                 # [B, NC]

    # ---- margin: one vectorized compare vs per-row targets (SMEM scalars)
    col = lax.broadcasted_iota(jnp.int32, (B, NUM_CLASSES), 1)
    row = lax.broadcasted_iota(jnp.int32, (B, NUM_CLASSES), 0)
    tsel = jnp.full((B, NUM_CLASSES), tgt_ref[0], jnp.int32)
    for b in range(1, B):                                # B is tiny & static
        tsel = jnp.where(row == b, tgt_ref[b], tsel)
    margin = jnp.where(col == tsel, SCALE * MARGIN, 0.0)

    logits_ref[...] = (SCALE * cos - margin).astype(logits_ref.dtype)


def forward_pallas(x_flat, targets, consts, w_pack):
    flops = 2 * (N_TAPS * C_OUT * C_IN * BHW          # conv taps
                 + B * BHW * C_OUT                    # pooling matmul
                 + B * C_OUT * EMBED_DIM              # projection
                 + B * EMBED_DIM * NUM_CLASSES)       # head cos
    bytes_accessed = 4 * (x_flat.size + consts.size + w_pack.size
                          + targets.size + B * NUM_CLASSES)
    return pl.pallas_call(
        fused_kernel,
        out_shape=jax.ShapeDtypeStruct((B, NUM_CLASSES), jnp.float32),
        grid_spec=pltpu.PrefetchScalarGridSpec(
            num_scalar_prefetch=1,                    # targets -> SMEM
            grid=(1,),                                # single step: whole batch
            in_specs=[
                pl.BlockSpec((B * C_IN, HW), lambda i, tgt: (0, 0)),
                pl.BlockSpec((C_ROWS, BHW), lambda i, tgt: (0, 0)),
                pl.BlockSpec((W_ROWS, 128), lambda i, tgt: (0, 0)),
            ],
            out_specs=pl.BlockSpec((B, NUM_CLASSES), lambda i, tgt: (0, 0)),
        ),
        compiler_params=pltpu.CompilerParams(
            dimension_semantics=("arbitrary",)),
        cost_estimate=pl.CostEstimate(
            flops=flops, transcendentals=B, bytes_accessed=bytes_accessed),
    )(targets, x_flat, consts, w_pack)


# ------------------------------- glue (JAX) ---------------------------------
@jax.jit
def forward(x, targets, consts, w_pack):
    # [B,C,H,W] -> [B*C_IN, HW] is a contiguous (free) reshape; all layout work
    # (lane-dense transpose, 9 conv taps) happens inside the fused kernel.
    return forward_pallas(x.reshape(B * C_IN, HW), targets, consts, w_pack)


def init_params(key):
    k1, k2, k3, k4, k5 = jax.random.split(key, 5)
    return dict(
        wconv=jax.random.normal(k1, (C_OUT, C_IN, 3, 3), jnp.float32) * 0.1,
        bconv=jax.random.normal(k2, (C_OUT,), jnp.float32) * 0.01,
        wproj=jax.random.normal(k3, (C_OUT, EMBED_DIM), jnp.float32) * 0.1,
        bproj=jax.random.normal(k4, (EMBED_DIM,), jnp.float32) * 0.01,
        whead=jax.random.normal(k5, (EMBED_DIM, NUM_CLASSES), jnp.float32) * 0.1)


def pack_params(params):
    """One-time packing (per optimizer step, not per forward call): every weight
    and bias lands in a single [W_ROWS,128] f32 slab -> one HBM->VMEM DMA.
    whead is pre-normalized here so the kernel skips the per-call weight norm."""
    w = np.zeros((W_ROWS, 128), np.float32)
    wconv = np.asarray(params["wconv"], np.float32)
    for t in range(N_TAPS):
        ky, kx = t // 3, t % 3
        w[R_WCONV + 8 * t:R_WCONV + 8 * t + C_OUT, 0:C_IN] = wconv[:, :, ky, kx]
    w[R_WPROJ:R_WPROJ + C_OUT, 0:EMBED_DIM] = np.asarray(params["wproj"], np.float32)
    w[R_BCONV:R_BCONV + C_OUT, 0] = np.asarray(params["bconv"], np.float32)
    w[R_BPROJ, 0:EMBED_DIM] = np.asarray(params["bproj"], np.float32)
    wh = np.asarray(params["whead"], np.float32)
    w[R_WHEAD:R_WHEAD + EMBED_DIM, 0:NUM_CLASSES] = (
        wh / np.sqrt((wh * wh).sum(0, keepdims=True) + 1e-12))
    return jnp.asarray(w)


def build_consts():
    """Static [C_ROWS, BHW] slab: 9 conv-tap boundary masks + B pooling rows."""
    c = np.zeros((C_ROWS, BHW), np.float32)
    hh = np.arange(H)[:, None]
    ww = np.arange(W)[None, :]
    for t in range(N_TAPS):
        dy, dx = t // 3 - 1, t % 3 - 1
        valid = ((hh + dy >= 0) & (hh + dy < H)
                 & (ww + dx >= 0) & (ww + dx < W)).astype(np.float32)   # [H, W]
        c[t] = np.tile(valid.reshape(-1), B)
    for b in range(B):
        c[R_POOL + b, b * HW:(b + 1) * HW] = 1.0 / HW
    return jnp.asarray(c)


def reference_forward(x, targets, params):
    """Pure-JAX f32 reference (PyTorch semantics) for the sanity check."""
    hp = lax.Precision.HIGHEST
    conv = lax.conv_general_dilated(
        x, params["wconv"], window_strides=(1, 1), padding=((1, 1), (1, 1)),
        dimension_numbers=("NCHW", "OIHW", "NCHW"), precision=hp)
    conv = jax.nn.relu(conv + params["bconv"].reshape(1, C_OUT, 1, 1))
    pooled = conv.mean(axis=(2, 3))                                     # [B, C_OUT]
    emb = jnp.dot(pooled, params["wproj"], precision=hp) + params["bproj"]
    emb_n = emb * lax.rsqrt((emb * emb).sum(-1, keepdims=True) + 1e-12)
    wh = params["whead"]
    wh_n = wh * lax.rsqrt((wh * wh).sum(0, keepdims=True) + 1e-12)
    cos = jnp.dot(emb_n, wh_n, precision=hp)
    onehot = jax.nn.one_hot(targets, NUM_CLASSES, dtype=cos.dtype)
    return SCALE * (cos - MARGIN * onehot)


if __name__ == "__main__":
    key = jax.random.PRNGKey(0)
    kx, kt, kp = jax.random.split(key, 3)
    x = jax.random.normal(kx, (B, C_IN, H, W), jnp.float32)             # NCHW
    targets = jax.random.randint(kt, (B,), 0, NUM_CLASSES, jnp.int32)
    params = init_params(kp)
    w_pack = pack_params(params)       # once per parameter update
    consts = build_consts()            # once, ever

    logits = forward(x, targets, consts, w_pack)
    jax.block_until_ready(logits)
    assert logits.shape == (B, NUM_CLASSES) and logits.dtype == jnp.float32

    ref = reference_forward(x, targets, params)
    # f32 end-to-end -> much tighter tolerance than the old bf16 version
    assert jnp.allclose(logits, ref, atol=0.1), (logits, ref)
    print("KERNEL_OK")
</pallas_src>

<mosaic_0001>
module attributes {stable_mosaic.version = 11 : i64} {
  func.func @fused_kernel(%arg0: i32, %arg1: memref<2xi32, #tpu.memory_space<smem>>, %arg2: memref<8x256xf32, #tpu.memory_space<vmem>>, %arg3: memref<11x512xf32, #tpu.memory_space<vmem>>, %arg4: memref<128x128xf32, #tpu.memory_space<vmem>>, %arg5: memref<2x16xf32, #tpu.memory_space<vmem>>) attributes {dimension_semantics = [#tpu.dimension_semantics<arbitrary>], iteration_bounds = array<i64: 1>, scalar_prefetch = 1 : i64, scratch_operands = 0 : i64, tpu.core_type = #tpu.core_type<tc>, window_params = [{pipeline_mode = #tpu.pipeline_mode<synchronous>, transform_indices = @transform_0, window_bounds = array<i64: 8, 256>}, {pipeline_mode = #tpu.pipeline_mode<synchronous>, transform_indices = @transform_1, window_bounds = array<i64: 11, 512>}, {pipeline_mode = #tpu.pipeline_mode<synchronous>, transform_indices = @transform_2, window_bounds = array<i64: 128, 128>}, {pipeline_mode = #tpu.pipeline_mode<synchronous>, transform_indices = @transform_3, window_bounds = array<i64: 2, 16>}]} {
    %c0 = arith.constant 0 : index
    %c0_0 = arith.constant 0 : index
    %0 = vector.load %arg2[%c0, %c0_0] : memref<8x256xf32, #tpu.memory_space<vmem>>, vector<4x256xf32>
    %c4 = arith.constant 4 : index
    %c0_1 = arith.constant 0 : index
    %1 = vector.load %arg2[%c4, %c0_1] : memref<8x256xf32, #tpu.memory_space<vmem>>, vector<4x256xf32>
    %2 = tpu.concatenate %0, %1 in 1 : vector<4x256xf32>, vector<4x256xf32> -> vector<4x512xf32>
    %c80 = arith.constant 80 : index
    %c0_2 = arith.constant 0 : index
    %3 = vector.load %arg4[%c80, %c0_2] : memref<128x128xf32, #tpu.memory_space<vmem>>, vector<8x1xf32>
    %4 = vector.shape_cast %3 : vector<8x1xf32> to vector<8x1xf32>
    %5 = vector.broadcast %4 : vector<8x1xf32> to vector<8x512xf32>
    %c17_i32 = arith.constant 17 : i32
    %6 = tpu.dynamic_rotate %2 by %c17_i32 dim 1 : vector<4x512xf32>, i32 -> vector<4x512xf32>
    %c0_3 = arith.constant 0 : index
    %c0_4 = arith.constant 0 : index
    %7 = vector.load %arg3[%c0_3, %c0_4] : memref<11x512xf32, #tpu.memory_space<vmem>>, vector<1x512xf32>
    %8 = vector.broadcast %7 : vector<1x512xf32> to vector<4x512xf32>
    %9 = arith.mulf %6, %8 : vector<4x512xf32>
    %c0_5 = arith.constant 0 : index
    %c0_6 = arith.constant 0 : index
    %10 = vector.load %arg4[%c0_5, %c0_6] : memref<128x128xf32, #tpu.memory_space<vmem>>, vector<8x4xf32>
    %cst = arith.constant dense<0.000000e+00> : vector<8x512xf32>
    %11 = tpu.matmul %10, %9, %cst {dimension_numbers = #tpu.dot_dimension_numbers<[1], [0], [0], [1], [0, 0, 1, 1], [], []>} : vector<8x4xf32>, vector<4x512xf32>, vector<8x512xf32> -> vector<8x512xf32>
    %12 = arith.addf %5, %11 : vector<8x512xf32>
    %c16_i32 = arith.constant 16 : i32
    %13 = tpu.dynamic_rotate %2 by %c16_i32 dim 1 : vector<4x512xf32>, i32 -> vector<4x512xf32>
    %c1 = arith.constant 1 : index
    %c0_7 = arith.constant 0 : index
    %14 = vector.load %arg3[%c1, %c0_7] : memref<11x512xf32, #tpu.memory_space<vmem>>, vector<1x512xf32>
    %15 = vector.broadcast %14 : vector<1x512xf32> to vector<4x512xf32>
    %16 = arith.mulf %13, %15 : vector<4x512xf32>
    %c8 = arith.constant 8 : index
    %c0_8 = arith.constant 0 : index
    %17 = vector.load %arg4[%c8, %c0_8] : memref<128x128xf32, #tpu.memory_space<vmem>>, vector<8x4xf32>
    %cst_9 = arith.constant dense<0.000000e+00> : vector<8x512xf32>
    %18 = tpu.matmul %17, %16, %cst_9 {dimension_numbers = #tpu.dot_dimension_numbers<[1], [0], [0], [1], [0, 0, 1, 1], [], []>} : vector<8x4xf32>, vector<4x512xf32>, vector<8x512xf32> -> vector<8x512xf32>
    %19 = arith.addf %12, %18 : vector<8x512xf32>
    %c15_i32 = arith.constant 15 : i32
    %20 = tpu.dynamic_rotate %2 by %c15_i32 dim 1 : vector<4x512xf32>, i32 -> vector<4x512xf32>
    %c2 = arith.constant 2 : index
    %c0_10 = arith.constant 0 : index
    %21 = vector.load %arg3[%c2, %c0_10] : memref<11x512xf32, #tpu.memory_space<vmem>>, vector<1x512xf32>
    %22 = vector.broadcast %21 : vector<1x512xf32> to vector<4x512xf32>
    %23 = arith.mulf %20, %22 : vector<4x512xf32>
    %c16 = arith.constant 16 : index
    %c0_11 = arith.constant 0 : index
    %24 = vector.load %arg4[%c16, %c0_11] : memref<128x128xf32, #tpu.memory_space<vmem>>, vector<8x4xf32>
    %cst_12 = arith.constant dense<0.000000e+00> : vector<8x512xf32>
    %25 = tpu.matmul %24, %23, %cst_12 {dimension_numbers = #tpu.dot_dimension_numbers<[1], [0], [0], [1], [0, 0, 1, 1], [], []>} : vector<8x4xf32>, vector<4x512xf32>, vector<8x512xf32> -> vector<8x512xf32>
    %26 = arith.addf %19, %25 : vector<8x512xf32>
    %c1_i32 = arith.constant 1 : i32
    %27 = tpu.dynamic_rotate %2 by %c1_i32 dim 1 : vector<4x512xf32>, i32 -> vector<4x512xf32>
    %c3 = arith.constant 3 : index
    %c0_13 = arith.constant 0 : index
    %28 = vector.load %arg3[%c3, %c0_13] : memref<11x512xf32, #tpu.memory_space<vmem>>, vector<1x512xf32>
    %29 = vector.broadcast %28 : vector<1x512xf32> to vector<4x512xf32>
    %30 = arith.mulf %27, %29 : vector<4x512xf32>
    %c24 = arith.constant 24 : index
    %c0_14 = arith.constant 0 : index
    %31 = vector.load %arg4[%c24, %c0_14] : memref<128x128xf32, #tpu.memory_space<vmem>>, vector<8x4xf32>
    %cst_15 = arith.constant dense<0.000000e+00> : vector<8x512xf32>
    %32 = tpu.matmul %31, %30, %cst_15 {dimension_numbers = #tpu.dot_dimension_numbers<[1], [0], [0], [1], [0, 0, 1, 1], [], []>} : vector<8x4xf32>, vector<4x512xf32>, vector<8x512xf32> -> vector<8x512xf32>
    %33 = arith.addf %26, %32 : vector<8x512xf32>
    %c32 = arith.constant 32 : index
    %c0_16 = arith.constant 0 : index
    %34 = vector.load %arg4[%c32, %c0_16] : memref<128x128xf32, #tpu.memory_space<vmem>>, vector<8x4xf32>
    %cst_17 = arith.constant dense<0.000000e+00> : vector<8x512xf32>
    %35 = tpu.matmul %34, %2, %cst_17 {dimension_numbers = #tpu.dot_dimension_numbers<[1], [0], [0], [1], [0, 0, 1, 1], [], []>} : vector<8x4xf32>, vector<4x512xf32>, vector<8x512xf32> -> vector<8x512xf32>
    %36 = arith.addf %33, %35 : vector<8x512xf32>
    %c511_i32 = arith.constant 511 : i32
    %37 = tpu.dynamic_rotate %2 by %c511_i32 dim 1 : vector<4x512xf32>, i32 -> vector<4x512xf32>
    %c5 = arith.constant 5 : index
    %c0_18 = arith.constant 0 : index
    %38 = vector.load %arg3[%c5, %c0_18] : memref<11x512xf32, #tpu.memory_space<vmem>>, vector<1x512xf32>
    %39 = vector.broadcast %38 : vector<1x512xf32> to vector<4x512xf32>
    %40 = arith.mulf %37, %39 : vector<4x512xf32>
    %c40 = arith.constant 40 : index
    %c0_19 = arith.constant 0 : index
    %41 = vector.load %arg4[%c40, %c0_19] : memref<128x128xf32, #tpu.memory_space<vmem>>, vector<8x4xf32>
    %cst_20 = arith.constant dense<0.000000e+00> : vector<8x512xf32>
    %42 = tpu.matmul %41, %40, %cst_20 {dimension_numbers = #tpu.dot_dimension_numbers<[1], [0], [0], [1], [0, 0, 1, 1], [], []>} : vector<8x4xf32>, vector<4x512xf32>, vector<8x512xf32> -> vector<8x512xf32>
    %43 = arith.addf %36, %42 : vector<8x512xf32>
    %c497_i32 = arith.constant 497 : i32
    %44 = tpu.dynamic_rotate %2 by %c497_i32 dim 1 : vector<4x512xf32>, i32 -> vector<4x512xf32>
    %c6 = arith.constant 6 : index
    %c0_21 = arith.constant 0 : index
    %45 = vector.load %arg3[%c6, %c0_21] : memref<11x512xf32, #tpu.memory_space<vmem>>, vector<1x512xf32>
    %46 = vector.broadcast %45 : vector<1x512xf32> to vector<4x512xf32>
    %47 = arith.mulf %44, %46 : vector<4x512xf32>
    %c48 = arith.constant 48 : index
    %c0_22 = arith.constant 0 : index
    %48 = vector.load %arg4[%c48, %c0_22] : memref<128x128xf32, #tpu.memory_space<vmem>>, vector<8x4xf32>
    %cst_23 = arith.constant dense<0.000000e+00> : vector<8x512xf32>
    %49 = tpu.matmul %48, %47, %cst_23 {dimension_numbers = #tpu.dot_dimension_numbers<[1], [0], [0], [1], [0, 0, 1, 1], [], []>} : vector<8x4xf32>, vector<4x512xf32>, vector<8x512xf32> -> vector<8x512xf32>
    %50 = arith.addf %43, %49 : vector<8x512xf32>
    %c496_i32 = arith.constant 496 : i32
    %51 = tpu.dynamic_rotate %2 by %c496_i32 dim 1 : vector<4x512xf32>, i32 -> vector<4x512xf32>
    %c7 = arith.constant 7 : index
    %c0_24 = arith.constant 0 : index
    %52 = vector.load %arg3[%c7, %c0_24] : memref<11x512xf32, #tpu.memory_space<vmem>>, vector<1x512xf32>
    %53 = vector.broadcast %52 : vector<1x512xf32> to vector<4x512xf32>
    %54 = arith.mulf %51, %53 : vector<4x512xf32>
    %c56 = arith.constant 56 : index
    %c0_25 = arith.constant 0 : index
    %55 = vector.load %arg4[%c56, %c0_25] : memref<128x128xf32, #tpu.memory_space<vmem>>, vector<8x4xf32>
    %cst_26 = arith.constant dense<0.000000e+00> : vector<8x512xf32>
    %56 = tpu.matmul %55, %54, %cst_26 {dimension_numbers = #tpu.dot_dimension_numbers<[1], [0], [0], [1], [0, 0, 1, 1], [], []>} : vector<8x4xf32>, vector<4x512xf32>, vector<8x512xf32> -> vector<8x512xf32>
    %57 = arith.addf %50, %56 : vector<8x512xf32>
    %c495_i32 = arith.constant 495 : i32
    %58 = tpu.dynamic_rotate %2 by %c495_i32 dim 1 : vector<4x512xf32>, i32 -> vector<4x512xf32>
    %c8_27 = arith.constant 8 : index
    %c0_28 = arith.constant 0 : index
    %59 = vector.load %arg3[%c8_27, %c0_28] : memref<11x512xf32, #tpu.memory_space<vmem>>, vector<1x512xf32>
    %60 = vector.broadcast %59 : vector<1x512xf32> to vector<4x512xf32>
    %61 = arith.mulf %58, %60 : vector<4x512xf32>
    %c64 = arith.constant 64 : index
    %c0_29 = arith.constant 0 : index
    %62 = vector.load %arg4[%c64, %c0_29] : memref<128x128xf32, #tpu.memory_space<vmem>>, vector<8x4xf32>
    %cst_30 = arith.constant dense<0.000000e+00> : vector<8x512xf32>
    %63 = tpu.matmul %62, %61, %cst_30 {dimension_numbers = #tpu.dot_dimension_numbers<[1], [0], [0], [1], [0, 0, 1, 1], [], []>} : vector<8x4xf32>, vector<4x512xf32>, vector<8x512xf32> -> vector<8x512xf32>
    %64 = arith.addf %57, %63 : vector<8x512xf32>
    %cst_31 = arith.constant 0.000000e+00 : f32
    %65 = vector.broadcast %cst_31 : f32 to vector<8x512xf32>
    %66 = arith.maximumf %64, %65 : vector<8x512xf32>
    %c9 = arith.constant 9 : index
    %c0_32 = arith.constant 0 : index
    %67 = vector.load %arg3[%c9, %c0_32] : memref<11x512xf32, #tpu.memory_space<vmem>>, vector<2x512xf32>
    %cst_33 = arith.constant dense<0.000000e+00> : vector<2x8xf32>
    %68 = tpu.matmul %67, %66, %cst_33 {dimension_numbers = #tpu.dot_dimension_numbers<[1], [1], [0], [0], [0, 0, 1, 0], [], []>} : vector<2x512xf32>, vector<8x512xf32>, vector<2x8xf32> -> vector<2x8xf32>
    %c72 = arith.constant 72 : index
    %c0_34 = arith.constant 0 : index
    %69 = vector.load %arg4[%c72, %c0_34] : memref<128x128xf32, #tpu.memory_space<vmem>>, vector<8x32xf32>
    %cst_35 = arith.constant dense<0.000000e+00> : vector<2x32xf32>
    %70 = tpu.matmul %68, %69, %cst_35 {dimension_numbers = #tpu.dot_dimension_numbers<[1], [0], [0], [1], [0, 0, 1, 1], [], []>} : vector<2x8xf32>, vector<8x32xf32>, vector<2x32xf32> -> vector<2x32xf32>
    %c88 = arith.constant 88 : index
    %c0_36 = arith.constant 0 : index
    %71 = vector.load %arg4[%c88, %c0_36] : memref<128x128xf32, #tpu.memory_space<vmem>>, vector<1x32xf32>
    %72 = vector.broadcast %71 : vector<1x32xf32> to vector<2x32xf32>
    %73 = arith.addf %70, %72 : vector<2x32xf32>
    %74 = arith.mulf %73, %73 : vector<2x32xf32>
    %cst_37 = arith.constant dense<0.000000e+00> : vector<2xf32>
    %75 = vector.multi_reduction <add>, %74, %cst_37 [1] : vector<2x32xf32> to vector<2xf32>
    %76 = vector.shape_cast %75 : vector<2xf32> to vector<2x1xf32>
    %cst_38 = arith.constant 9.99999996E-13 : f32
    %77 = vector.broadcast %cst_38 : f32 to vector<2x1xf32>
    %78 = arith.addf %76, %77 : vector<2x1xf32>
    %79 = math.rsqrt %78 : vector<2x1xf32>
    %80 = vector.broadcast %79 : vector<2x1xf32> to vector<2x32xf32>
    %81 = arith.mulf %73, %80 : vector<2x32xf32>
    %c96 = arith.constant 96 : index
    %c0_39 = arith.constant 0 : index
    %82 = vector.load %arg4[%c96, %c0_39] : memref<128x128xf32, #tpu.memory_space<vmem>>, vector<32x16xf32>
    %cst_40 = arith.constant dense<0.000000e+00> : vector<2x16xf32>
    %83 = tpu.matmul %81, %82, %cst_40 {dimension_numbers = #tpu.dot_dimension_numbers<[1], [0], [0], [1], [0, 0, 1, 1], [], []>} : vector<2x32xf32>, vector<32x16xf32>, vector<2x16xf32> -> vector<2x16xf32>
    %84 = tpu.iota {dimensions = array<i32: 1>} : vector<2x16xi32>
    %85 = tpu.iota {dimensions = array<i32: 0>} : vector<2x16xi32>
    %c0_41 = arith.constant 0 : index
    %86 = memref.load %arg1[%c0_41] : memref<2xi32, #tpu.memory_space<smem>>
    %87 = vector.broadcast %86 : i32 to vector<2x16xi32>
    %c1_i32_42 = arith.constant 1 : i32
    %88 = vector.broadcast %c1_i32_42 : i32 to vector<2x16xi32>
    %89 = arith.cmpi eq, %85, %88 : vector<2x16xi32>
    %c1_43 = arith.constant 1 : index
    %90 = memref.load %arg1[%c1_43] : memref<2xi32, #tpu.memory_space<smem>>
    %91 = vector.broadcast %90 : i32 to vector<2x16xi32>
    %92 = arith.select %89, %91, %87 : vector<2x16xi1>, vector<2x16xi32>
    %93 = arith.cmpi eq, %84, %92 : vector<2x16xi32>
    %cst_44 = arith.constant 3.200000e+00 : f32
    %cst_45 = arith.constant 0.000000e+00 : f32
    %94 = vector.broadcast %cst_44 : f32 to vector<2x16xf32>
    %95 = vector.broadcast %cst_45 : f32 to vector<2x16xf32>
    %96 = arith.select %93, %94, %95 : vector<2x16xi1>, vector<2x16xf32>
    %cst_46 = arith.constant 1.600000e+01 : f32
    %97 = vector.broadcast %cst_46 : f32 to vector<2x16xf32>
    %98 = arith.mulf %97, %83 : vector<2x16xf32>
    %99 = arith.subf %98, %96 : vector<2x16xf32>
    %c0_47 = arith.constant 0 : index
    %c0_48 = arith.constant 0 : index
    %100 = vector.load %arg5[%c0_47, %c0_48] : memref<2x16xf32, #tpu.memory_space<vmem>>, vector<2x16xf32>
    tpu.vector_store %arg5[%c0_47, %c0_48], %99 {strides = array<i32>} : memref<2x16xf32, #tpu.memory_space<vmem>>, vector<2x16xf32>,
    return
  }
  func.func @transform_0(%arg0: i32, %arg1: memref<2xi32, #tpu.memory_space<smem>>) -> (i32, i32) {
    %c0_i32 = arith.constant 0 : i32
    %c0_i32_0 = arith.constant 0 : i32
    %c0_i32_1 = arith.constant 0 : i32
    return %c0_i32, %c0_i32_0 : i32, i32
  }
  func.func @transform_1(%arg0: i32, %arg1: memref<2xi32, #tpu.memory_space<smem>>) -> (i32, i32) {
    %c0_i32 = arith.constant 0 : i32
    %c0_i32_0 = arith.constant 0 : i32
    %c0_i32_1 = arith.constant 0 : i32
    return %c0_i32, %c0_i32_0 : i32, i32
  }
  func.func @transform_2(%arg0: i32, %arg1: memref<2xi32, #tpu.memory_space<smem>>) -> (i32, i32) {
    %c0_i32 = arith.constant 0 : i32
    %c0_i32_0 = arith.constant 0 : i32
    %c0_i32_1 = arith.constant 0 : i32
    return %c0_i32, %c0_i32_0 : i32, i32
  }
  func.func @transform_3(%arg0: i32, %arg1: memref<2xi32, #tpu.memory_space<smem>>) -> (i32, i32) {
    %c0_i32 = arith.constant 0 : i32
    %c0_i32_0 = arith.constant 0 : i32
    %c0_i32_1 = arith.constant 0 : i32
    return %c0_i32, %c0_i32_0 : i32, i32
  }
}

</mosaic_0001>

<llo_original>
// kernel: forward.1
$region0: #{forward.1}
  #allocation0 [shape = 'u32[]', space=smem, size = 0x4, offset = 0x4, fixed_abs, tag = 'smem constant byte address 0x4 - core index']
  #allocation1 [shape = 'u32[144,128]{1,0:T(1,128)}', space=vmem, size = 0x12000, scoped, tag = 'internal scratch']
  #allocation2 [shape = 's32[1]{0}', space=sflag, size = 0x4, scoped, tag = 'scoped memory for forward.1']
  #allocation3 [shape = 'u8[512]{0}', space=smem, size = 0x200, scoped, tag = 'prefetched SMEM operand 0']
  %s0 = inlined_call_operand.vmem [shape: s32[2], index: 0, kind: input, shape index: {}]
  %s1 = inlined_call_operand.vmem [shape: f32[8,256], index: 1, kind: input, shape index: {}]
  %s2 = inlined_call_operand.hbm [shape: f32[11,512], index: 2, kind: input, shape index: {}]
  %s3 = inlined_call_operand.vmem [shape: f32[128,128], index: 3, kind: input, shape index: {}]
  %s4 = inlined_call_operand.hbm [shape: f32[2,16], index: 4, kind: output, shape index: {}]
  %s5 = sld [smem:[#allocation0]]
  $region26: #{forward.1} parent=0
    _
  %s7 = ssub.s32 1, %s5
  %s8 = scalar_select 0, %s7, %s5
  %s9 = sshll.u32 %s0, 4
  %s10 = int_to_ptr.vmem [resolvable:$true] %s9
  %12 = dma.vmem_to_smem %s10, 16, [#allocation3], [#allocation2]
  %13 = dma.done [#allocation2], 16
  %14 = sfence
  $region1: #{forward.1} parent=0
    #allocation4 [shape = 'u8[32768]{0}', space=vmem, size = 0x8000, scoped, tag = 'input window, operand 2, single buffered']
    #allocation5 [shape = 's32[1]{0}', space=sflag, size = 0x4, scoped, tag = 'scoped memory for forward.1']
    #allocation6 [shape = 's32[1]{0}', space=sflag, size = 0x4, scoped, tag = 'scoped memory for forward.1']
    #allocation7 [shape = 'u8[1024]{0}', space=vmem, size = 0x400, scoped, tag = 'output window, operand 0, single buffered']
    %15 = vsyncpa [#allocation5], 0
    %16 = vsyncpa [#allocation6], 0
    // Predicated region
    $region2: #{forward.1} parent=1 // pred_check
      _
    $region3: #{forward.1} parent=1 // pred_check_branch
      %18 = sbr.rel (0) target = $region5
    $region4: #{forward.1} parent=1 // pred_region
      _
    $region5: #{forward.1} parent=1 // pred_fallthru
      _
    // Predicated region
    $region6: #{forward.1} parent=1 // pred_check
      _
    $region7: #{forward.1} parent=1 // pred_check_branch
      %20 = sbr.rel (0) target = $region9
    $region8: #{forward.1} parent=1 // pred_region
      %s22 = ssub.s32 1024, 1024
      %23 = vsyncadd [#allocation5], %s22
      %s24 = sshll.u32 [#allocation4], 4
      %s25 = int_to_ptr.vmem [resolvable:$true] %s24
      %30 = dma.hbm_to_vmem [thread:$0]  %s2, 1024, %s25, [#allocation5], 512, 512, 32
    $region9: #{forward.1} parent=1 // pred_fallthru
      _
    // Predicated region
    $region10: #{forward.1} parent=1 // pred_check
      _
    $region11: #{forward.1} parent=1 // pred_check_branch
      %32 = sbr.rel (0) target = $region13
    $region12: #{forward.1} parent=1 // pred_region
      _
    $region13: #{forward.1} parent=1 // pred_fallthru
      _
    // Predicated region
    $region14: #{forward.1} parent=1 // pred_check
      _
    $region15: #{forward.1} parent=1 // pred_check_branch
      %34 = sbr.rel (0) target = $region17
    $region16: #{forward.1} parent=1 // pred_region
      %35 = dma.done [#allocation5], 1024
    $region17: #{forward.1} parent=1 // pred_fallthru
      _
    %v36 = vld [vmem:[%s1] sm:$0xf]
    %v37 = vld [vmem:[%s1 + $0x8] sm:$0xf]
    %v38 = vld [vmem:[%s1] sm:$0xf0]
    %v39 = vld [vmem:[%s1 + $0x8] sm:$0xf0]
    %v42 = vrot.slane %v38, 4
    %v43 = vrot.slane %v39, 4
    %v46 = vld [vmem:[%s3 + $0x50] sm:$0xff]
    %48 = vset.pattern.permute.xlu0 0
    %49 = vperm.xlu0 %48, %v46
    %v50 = vpop.permute.xlu0 %49
    %52 = vrot.lane.b32.xlu0 %v36, 17
    %v53 = vpop.permute.xlu0 %52
    %54 = vrot.lane.b32.xlu0 %v37, 17
    %v55 = vpop.permute.xlu0 %54
    %56 = vrot.lane.b32.xlu0 %v42, 17
    %v57 = vpop.permute.xlu0 %56
    %58 = vrot.lane.b32.xlu0 %v43, 17
    %v59 = vpop.permute.xlu0 %58
    %v60 = vlaneseq
    %v61 = vand.u32 %v60, 127
    %vm62 = vcmp.lt.s32.totalorder %v61, 17
    %v63 = vsel %vm62, %v57, %v59
    %v64 = vsel %vm62, %v55, %v57
    %v65 = vsel %vm62, %v53, %v55
    %v66 = vsel %vm62, %v59, %v53
    %v67 = vld [vmem:[#allocation4] ss:$8 sm:$0xf]
    %v69 = vlaneseq
    %v70 = vshrl.u32 %v69, 7
    %v71 = vsub.s32 0, %v70
    %v72 = vrot.slane %v67, %v71
    %v73 = vlaneseq
    %v74 = vshrl.u32 %v73, 7
    %v75 = vsub.s32 1, %v74
    %v76 = vrot.slane %v67, %v75
    %v77 = vlaneseq
    %v78 = vshrl.u32 %v77, 7
    %v79 = vsub.s32 2, %v78
    %v80 = vrot.slane %v67, %v79
    %v81 = vlaneseq
    %v82 = vshrl.u32 %v81, 7
    %v83 = vsub.s32 3, %v82
    %v84 = vrot.slane %v67, %v83
    %v89 = vmul.f32 %v66, %v72
    %v90 = vmul.f32 %v65, %v76
    %v91 = vmul.f32 %v64, %v80
    %v92 = vmul.f32 %v63, %v84
    %v93 = vld [vmem:[%s3] sm:$0xff]
    %vm94 = vcmask 31744
    %v96 = vsel %vm94, %v93, 0
    %vm98 = vcmask 1043456
    %v100 = vsel %vm98, %v89, 0
    %v103 = vsel %vm98, %v90, 0
    %v106 = vsel %vm98, %v91, 0
    %v109 = vsel %vm98, %v92, 0
    %111 = vmatprep.subr.mxu0 0.0
    %112 = vmatpush1.msra.mxu0 0.0
    %113 = vmatprep.subr.mxu0 0.0
    %114 = vmatpush1.msra.mxu0 0.0
    %115 = vmatprep.subr.mxu0 0.0
    %116 = vmatpush1.msra.mxu0 0.0
    %117 = vmatprep.subr.mxu0 0.0
    %118 = vmatpush1.msra.mxu0 0.0
    %119 = vmatprep.subr.mxu0 0.0
    %120 = vmatpush1.msra.mxu0 0.0
    %121 = vmatprep.subr.mxu0 0.0
    %122 = vmatpush1.msra.mxu0 0.0
    %123 = vmatprep.subr.mxu0 0.0
    %124 = vmatpush1.msra.mxu0 0.0
    %125 = vmatprep.subr.mxu0 0.0
    %126 = vmatpush1.msra.mxu0 0.0
    %127 = vmatprep.subr.mxu0 0.0
    %128 = vmatpush1.msra.mxu0 0.0
    %129 = vmatprep.subr.mxu0 0.0
    %130 = vmatpush1.msra.mxu0 0.0
    %131 = vmatprep.subr.mxu0 0.0
    %132 = vmatpush1.msra.mxu0 0.0
    %133 = vmatprep.subr.mxu0 0.0
    %134 = vmatpush1.msra.mxu0 0.0
    %135 = vmatprep.subr.mxu0 0.0
    %136 = vmatpush1.msra.mxu0 0.0
    %137 = vmatprep.subr.mxu0 0.0
    %138 = vmatpush1.msra.mxu0 0.0
    %139 = vmatprep.subr.mxu0 0.0
    %140 = vmatpush1.msra.mxu0 0.0
    %141 = vmatprep.subr.mxu0 %v103
    %142 = vmatpush1.msra.mxu0 %v100
    %143 = vmatprep.subr.mxu0 0.0
    %144 = vmatpush2.msra.mxu0 0.0
    %145 = vmatprep.subr.mxu0 0.0
    %146 = vmatpush2.msra.mxu0 0.0
    %147 = vmatprep.subr.mxu0 0.0
    %148 = vmatpush2.msra.mxu0 0.0
    %149 = vmatprep.subr.mxu0 0.0
    %150 = vmatpush2.msra.mxu0 0.0
    %151 = vmatprep.subr.mxu0 0.0
    %152 = vmatpush2.msra.mxu0 0.0
    %153 = vmatprep.subr.mxu0 0.0
    %154 = vmatpush2.msra.mxu0 0.0
    %155 = vmatprep.subr.mxu0 0.0
    %156 = vmatpush2.msra.mxu0 0.0
    %157 = vmatprep.subr.mxu0 0.0
    %158 = vmatpush2.msra.mxu0 0.0
    %159 = vmatprep.subr.mxu0 0.0
    %160 = vmatpush2.msra.mxu0 0.0
    %161 = vmatprep.subr.mxu0 0.0
    %162 = vmatpush2.msra.mxu0 0.0
    %163 = vmatprep.subr.mxu0 0.0
    %164 = vmatpush2.msra.mxu0 0.0
    %165 = vmatprep.subr.mxu0 0.0
    %166 = vmatpush2.msra.mxu0 0.0
    %167 = vmatprep.subr.mxu0 0.0
    %168 = vmatpush2.msra.mxu0 0.0
    %169 = vmatprep.subr.mxu0 0.0
    %170 = vmatpush2.msra.mxu0 0.0
    %171 = vmatprep.subr.mxu0 0.0
    %172 = vmatpush2.msra.mxu0 0.0
    %173 = vmatprep.subr.mxu0 0.0
    %174 = vmatpush2.msra.mxu0 0.0
    %175 = vmatprep.mubr.f32.mxu0 0.0
    %176 = vmatmul.mubr.f32.gmra.mxu0 %v96
    %v177 = vpop.f32.mrf.mxu0
    %v178 = vadd.f32 0.0, %v177
    %v179 = vpop.f32.mrf.mxu0
    %v180 = vadd.f32 0.0, %v179
    %181 = vdwg.mxu0
    %182 = vmatprep.subr.mxu0 0.0
    %183 = vmatpush1.msra.mxu0 0.0
    %184 = vmatprep.subr.mxu0 0.0
    %185 = vmatpush1.msra.mxu0 0.0
    %186 = vmatprep.subr.mxu0 0.0
    %187 = vmatpush1.msra.mxu0 0.0
    %188 = vmatprep.subr.mxu0 0.0
    %189 = vmatpush1.msra.mxu0 0.0
    %190 = vmatprep.subr.mxu0 0.0
    %191 = vmatpush1.msra.mxu0 0.0
    %192 = vmatprep.subr.mxu0 0.0
    %193 = vmatpush1.msra.mxu0 0.0
    %194 = vmatprep.subr.mxu0 0.0
    %195 = vmatpush1.msra.mxu0 0.0
    %196 = vmatprep.subr.mxu0 0.0
    %197 = vmatpush1.msra.mxu0 0.0
    %198 = vmatprep.subr.mxu0 0.0
    %199 = vmatpush1.msra.mxu0 0.0
    %200 = vmatprep.subr.mxu0 0.0
    %201 = vmatpush1.msra.mxu0 0.0
    %202 = vmatprep.subr.mxu0 0.0
    %203 = vmatpush1.msra.mxu0 0.0
    %204 = vmatprep.subr.mxu0 0.0
    %205 = vmatpush1.msra.mxu0 0.0
    %206 = vmatprep.subr.mxu0 0.0
    %207 = vmatpush1.msra.mxu0 0.0
    %208 = vmatprep.subr.mxu0 0.0
    %209 = vmatpush1.msra.mxu0 0.0
    %210 = vmatprep.subr.mxu0 0.0
    %211 = vmatpush1.msra.mxu0 0.0
    %212 = vmatprep.subr.mxu0 %v109
    %213 = vmatpush1.msra.mxu0 %v106
    %214 = vmatprep.subr.mxu0 0.0
    %215 = vmatpush2.msra.mxu0 0.0
    %216 = vmatprep.subr.mxu0 0.0
    %217 = vmatpush2.msra.mxu0 0.0
    %218 = vmatprep.subr.mxu0 0.0
    %219 = vmatpush2.msra.mxu0 0.0
    %220 = vmatprep.subr.mxu0 0.0
    %221 = vmatpush2.msra.mxu0 0.0
    %222 = vmatprep.subr.mxu0 0.0
    %223 = vmatpush2.msra.mxu0 0.0
    %224 = vmatprep.subr.mxu0 0.0
    %225 = vmatpush2.msra.mxu0 0.0
    %226 = vmatprep.subr.mxu0 0.0
    %227 = vmatpush2.msra.mxu0 0.0
    %228 = vmatprep.subr.mxu0 0.0
    %229 = vmatpush2.msra.mxu0 0.0
    %230 = vmatprep.subr.mxu0 0.0
    %231 = vmatpush2.msra.mxu0 0.0
    %232 = vmatprep.subr.mxu0 0.0
    %233 = vmatpush2.msra.mxu0 0.0
    %234 = vmatprep.subr.mxu0 0.0
    %235 = vmatpush2.msra.mxu0 0.0
    %236 = vmatprep.subr.mxu0 0.0
    %237 = vmatpush2.msra.mxu0 0.0
    %238 = vmatprep.subr.mxu0 0.0
    %239 = vmatpush2.msra.mxu0 0.0
    %240 = vmatprep.subr.mxu0 0.0
    %241 = vmatpush2.msra.mxu0 0.0
    %242 = vmatprep.subr.mxu0 0.0
    %243 = vmatpush2.msra.mxu0 0.0
    %244 = vmatprep.subr.mxu0 0.0
    %245 = vmatpush2.msra.mxu0 0.0
    %246 = vmatprep.mubr.f32.mxu0 0.0
    %247 = vmatmul.mubr.f32.gmra.mxu0 %v96
    %v248 = vpop.f32.mrf.mxu0
    %v249 = vadd.f32 0.0, %v248
    %v250 = vpop.f32.mrf.mxu0
    %v251 = vadd.f32 0.0, %v250
    %252 = vdwg.mxu0
    %v253 = vadd.f32 %v50, %v178
    %v254 = vadd.f32 %v50, %v180
    %v255 = vadd.f32 %v50, %v249
    %v256 = vadd.f32 %v50, %v251
    %257 = vrot.lane.b32.xlu0 %v36, 16
    %v258 = vpop.permute.xlu0 %257
    %259 = vrot.lane.b32.xlu0 %v37, 16
    %v260 = vpop.permute.xlu0 %259
    %261 = vrot.lane.b32.xlu0 %v42, 16
    %v262 = vpop.permute.xlu0 %261
    %263 = vrot.lane.b32.xlu0 %v43, 16
    %v264 = vpop.permute.xlu0 %263
    %vm265 = vcmp.lt.s32.totalorder %v61, 16
    %v266 = vsel %vm265, %v262, %v264
    %v267 = vsel %vm265, %v260, %v262
    %v268 = vsel %vm265, %v258, %v260
    %v269 = vsel %vm265, %v264, %v258
    %s270 = scalar_lea.vmem [#allocation4], 1
    %v271 = vld [vmem:[%s270] ss:$8 sm:$0xf]
    %v273 = vlaneseq
    %v274 = vshrl.u32 %v273, 7
    %v275 = vsub.s32 0, %v274
    %v276 = vrot.slane %v271, %v275
    %v277 = vlaneseq
    %v278 = vshrl.u32 %v277, 7
    %v279 = vsub.s32 1, %v278
    %v280 = vrot.slane %v271, %v279
    %v281 = vlaneseq
    %v282 = vshrl.u32 %v281, 7
    %v283 = vsub.s32 2, %v282
    %v284 = vrot.slane %v271, %v283
    %v285 = vlaneseq
    %v286 = vshrl.u32 %v285, 7
    %v287 = vsub.s32 3, %v286
    %v288 = vrot.slane %v271, %v287
    %v293 = vmul.f32 %v269, %v276
    %v294 = vmul.f32 %v268, %v280
    %v295 = vmul.f32 %v267, %v284
    %v296 = vmul.f32 %v266, %v288
    %v297 = vld [vmem:[%s3 + $0x8] sm:$0xff]
    %v299 = vsel %vm94, %v297, 0
    %v302 = vsel %vm98, %v293, 0
    %v305 = vsel %vm98, %v294, 0
    %v308 = vsel %vm98, %v295, 0
    %v311 = vsel %vm98, %v296, 0
    %313 = vmatprep.subr.mxu0 0.0
    %314 = vmatpush1.msra.mxu0 0.0
    %315 = vmatprep.subr.mxu0 0.0
    %316 = vmatpush1.msra.mxu0 0.0
    %317 = vmatprep.subr.mxu0 0.0
    %318 = vmatpush1.msra.mxu0 0.0
    %319 = vmatprep.subr.mxu0 0.0
    %320 = vmatpush1.msra.mxu0 0.0
    %321 = vmatprep.subr.mxu0 0.0
    %322 = vmatpush1.msra.mxu0 0.0
    %323 = vmatprep.subr.mxu0 0.0
    %324 = vmatpush1.msra.mxu0 0.0
    %325 = vmatprep.subr.mxu0 0.0
    %326 = vmatpush1.msra.mxu0 0.0
    %327 = vmatprep.subr.mxu0 0.0
    %328 = vmatpush1.msra.mxu0 0.0
    %329 = vmatprep.subr.mxu0 0.0
    %330 = vmatpush1.msra.mxu0 0.0
    %331 = vmatprep.subr.mxu0 0.0
    %332 = vmatpush1.msra.mxu0 0.0
    %333 = vmatprep.subr.mxu0 0.0
    %334 = vmatpush1.msra.mxu0 0.0
    %335 = vmatprep.subr.mxu0 0.0
    %336 = vmatpush1.msra.mxu0 0.0
    %337 = vmatprep.subr.mxu0 0.0
    %338 = vmatpush1.msra.mxu0 0.0
    %339 = vmatprep.subr.mxu0 0.0
    %340 = vmatpush1.msra.mxu0 0.0
    %341 = vmatprep.subr.mxu0 0.0
    %342 = vmatpush1.msra.mxu0 0.0
    %343 = vmatprep.subr.mxu0 %v305
    %344 = vmatpush1.msra.mxu0 %v302
    %345 = vmatprep.subr.mxu0 0.0
    %346 = vmatpush2.msra.mxu0 0.0
    %347 = vmatprep.subr.mxu0 0.0
    %348 = vmatpush2.msra.mxu0 0.0
    %349 = vmatprep.subr.mxu0 0.0
    %350 = vmatpush2.msra.mxu0 0.0
    %351 = vmatprep.subr.mxu0 0.0
    %352 = vmatpush2.msra.mxu0 0.0
    %353 = vmatprep.subr.mxu0 0.0
    %354 = vmatpush2.msra.mxu0 0.0
    %355 = vmatprep.subr.mxu0 0.0
    %356 = vmatpush2.msra.mxu0 0.0
    %357 = vmatprep.subr.mxu0 0.0
    %358 = vmatpush2.msra.mxu0 0.0
    %359 = vmatprep.subr.mxu0 0.0
    %360 = vmatpush2.msra.mxu0 0.0
    %361 = vmatprep.subr.mxu0 0.0
    %362 = vmatpush2.msra.mxu0 0.0
    %363 = vmatprep.subr.mxu0 0.0
    %364 = vmatpush2.msra.mxu0 0.0
    %365 = vmatprep.subr.mxu0 0.0
    %366 = vmatpush2.msra.mxu0 0.0
    %367 = vmatprep.subr.mxu0 0.0
    %368 = vmatpush2.msra.mxu0 0.0
    %369 = vmatprep.subr.mxu0 0.0
    %370 = vmatpush2.msra.mxu0 0.0
    %371 = vmatprep.subr.mxu0 0.0
    %372 = vmatpush2.msra.mxu0 0.0
    %373 = vmatprep.subr.mxu0 0.0
    %374 = vmatpush2.msra.mxu0 0.0
    %375 = vmatprep.subr.mxu0 0.0
    %376 = vmatpush2.msra.mxu0 0.0
    %377 = vmatprep.mubr.f32.mxu0 0.0
    %378 = vmatmul.mubr.f32.gmra.mxu0 %v299
    %v379 = vpop.f32.mrf.mxu0
    %v380 = vadd.f32 0.0, %v379
    %v381 = vpop.f32.mrf.mxu0
    %v382 = vadd.f32 0.0, %v381
    %383 = vdwg.mxu0
    %384 = vmatprep.subr.mxu0 0.0
    %385 = vmatpush1.msra.mxu0 0.0
    %386 = vmatprep.subr.mxu0 0.0
    %387 = vmatpush1.msra.mxu0 0.0
    %388 = vmatprep.subr.mxu0 0.0
    %389 = vmatpush1.msra.mxu0 0.0
    %390 = vmatprep.subr.mxu0 0.0
    %391 = vmatpush1.msra.mxu0 0.0
    %392 = vmatprep.subr.mxu0 0.0
    %393 = vmatpush1.msra.mxu0 0.0
    %394 = vmatprep.subr.mxu0 0.0
    %395 = vmatpush1.msra.mxu0 0.0
    %396 = vmatprep.subr.mxu0 0.0
    %397 = vmatpush1.msra.mxu0 0.0
    %398 = vmatprep.subr.mxu0 0.0
    %399 = vmatpush1.msra.mxu0 0.0
    %400 = vmatprep.subr.mxu0 0.0
    %401 = vmatpush1.msra.mxu0 0.0
    %402 = vmatprep.subr.mxu0 0.0
    %403 = vmatpush1.msra.mxu0 0.0
    %404 = vmatprep.subr.mxu0 0.0
    %405 = vmatpush1.msra.mxu0 0.0
    %406 = vmatprep.subr.mxu0 0.0
    %407 = vmatpush1.msra.mxu0 0.0
    %408 = vmatprep.subr.mxu0 0.0
    %409 = vmatpush1.msra.mxu0 0.0
    %410 = vmatprep.subr.mxu0 0.0
    %411 = vmatpush1.msra.mxu0 0.0
    %412 = vmatprep.subr.mxu0 0.0
    %413 = vmatpush1.msra.mxu0 0.0
    %414 = vmatprep.subr.mxu0 %v311
    %415 = vmatpush1.msra.mxu0 %v308
    %416 = vmatprep.subr.mxu0 0.0
    %417 = vmatpush2.msra.mxu0 0.0
    %418 = vmatprep.subr.mxu0 0.0
    %419 = vmatpush2.msra.mxu0 0.0
    %420 = vmatprep.subr.mxu0 0.0
    %421 = vmatpush2.msra.mxu0 0.0
    %422 = vmatprep.subr.mxu0 0.0
    %423 = vmatpush2.msra.mxu0 0.0
    %424 = vmatprep.subr.mxu0 0.0
    %425 = vmatpush2.msra.mxu0 0.0
    %426 = vmatprep.subr.mxu0 0.0
    %427 = vmatpush2.msra.mxu0 0.0
    %428 = vmatprep.subr.mxu0 0.0
    %429 = vmatpush2.msra.mxu0 0.0
    %430 = vmatprep.subr.mxu0 0.0
    %431 = vmatpush2.msra.mxu0 0.0
    %432 = vmatprep.subr.mxu0 0.0
    %433 = vmatpush2.msra.mxu0 0.0
    %434 = vmatprep.subr.mxu0 0.0
    %435 = vmatpush2.msra.mxu0 0.0
    %436 = vmatprep.subr.mxu0 0.0
    %437 = vmatpush2.msra.mxu0 0.0
    %438 = vmatprep.subr.mxu0 0.0
    %439 = vmatpush2.msra.mxu0 0.0
    %440 = vmatprep.subr.mxu0 0.0
    %441 = vmatpush2.msra.mxu0 0.0
    %442 = vmatprep.subr.mxu0 0.0
    %443 = vmatpush2.msra.mxu0 0.0
    %444 = vmatprep.subr.mxu0 0.0
    %445 = vmatpush2.msra.mxu0 0.0
    %446 = vmatprep.subr.mxu0 0.0
    %447 = vmatpush2.msra.mxu0 0.0
    %448 = vmatprep.mubr.f32.mxu0 0.0
    %449 = vmatmul.mubr.f32.gmra.mxu0 %v299
    %v450 = vpop.f32.mrf.mxu0
    %v451 = vadd.f32 0.0, %v450
    %v452 = vpop.f32.mrf.mxu0
    %v453 = vadd.f32 0.0, %v452
    %454 = vdwg.mxu0
    %v455 = vadd.f32 %v253, %v380
    %v456 = vadd.f32 %v254, %v382
    %v457 = vadd.f32 %v255, %v451
    %v458 = vadd.f32 %v256, %v453
    %459 = vrot.lane.b32.xlu0 %v36, 15
    %v460 = vpop.permute.xlu0 %459
    %461 = vrot.lane.b32.xlu0 %v37, 15
    %v462 = vpop.permute.xlu0 %461
    %463 = vrot.lane.b32.xlu0 %v42, 15
    %v464 = vpop.permute.xlu0 %463
    %465 = vrot.lane.b32.xlu0 %v43, 15
    %v466 = vpop.permute.xlu0 %465
    %vm467 = vcmp.lt.s32.totalorder %v61, 15
    %v468 = vsel %vm467, %v464, %v466
    %v469 = vsel %vm467, %v462, %v464
    %v470 = vsel %vm467, %v460, %v462
    %v471 = vsel %vm467, %v466, %v460
    %s472 = scalar_lea.vmem [#allocation4], 2
    %v473 = vld [vmem:[%s472] ss:$8 sm:$0xf]
    %v475 = vlaneseq
    %v476 = vshrl.u32 %v475, 7
    %v477 = vsub.s32 0, %v476
    %v478 = vrot.slane %v473, %v477
    %v479 = vlaneseq
    %v480 = vshrl.u32 %v479, 7
    %v481 = vsub.s32 1, %v480
    %v482 = vrot.slane %v473, %v481
    %v483 = vlaneseq
    %v484 = vshrl.u32 %v483, 7
    %v485 = vsub.s32 2, %v484
    %v486 = vrot.slane %v473, %v485
    %v487 = vlaneseq
    %v488 = vshrl.u32 %v487, 7
    %v489 = vsub.s32 3, %v488
    %v490 = vrot.slane %v473, %v489
    %v495 = vmul.f32 %v471, %v478
    %v496 = vmul.f32 %v470, %v482
    %v497 = vmul.f32 %v469, %v486
    %v498 = vmul.f32 %v468, %v490
    %v499 = vld [vmem:[%s3 + $0x10] sm:$0xff]
    %v501 = vsel %vm94, %v499, 0
    %v504 = vsel %vm98, %v495, 0
    %v507 = vsel %vm98, %v496, 0
    %v510 = vsel %vm98, %v497, 0
    %v513 = vsel %vm98, %v498, 0
    %515 = vmatprep.subr.mxu0 0.0
    %516 = vmatpush1.msra.mxu0 0.0
    %517 = vmatprep.subr.mxu0 0.0
    %518 = vmatpush1.msra.mxu0 0.0
    %519 = vmatprep.subr.mxu0 0.0
    %520 = vmatpush1.msra.mxu0 0.0
    %521 = vmatprep.subr.mxu0 0.0
    %522 = vmatpush1.msra.mxu0 0.0
    %523 = vmatprep.subr.mxu0 0.0
    %524 = vmatpush1.msra.mxu0 0.0
    %525 = vmatprep.subr.mxu0 0.0
    %526 = vmatpush1.msra.mxu0 0.0
    %527 = vmatprep.subr.mxu0 0.0
    %528 = vmatpush1.msra.mxu0 0.0
    %529 = vmatprep.subr.mxu0 0.0
    %530 = vmatpush1.msra.mxu0 0.0
    %531 = vmatprep.subr.mxu0 0.0
    %532 = vmatpush1.msra.mxu0 0.0
    %533 = vmatprep.subr.mxu0 0.0
    %534 = vmatpush1.msra.mxu0 0.0
    %535 = vmatprep.subr.mxu0 0.0
    %536 = vmatpush1.msra.mxu0 0.0
    %537 = vmatprep.subr.mxu0 0.0
    %538 = vmatpush1.msra.mxu0 0.0
    %539 = vmatprep.subr.mxu0 0.0
    %540 = vmatpush1.msra.mxu0 0.0
    %541 = vmatprep.subr.mxu0 0.0
    %542 = vmatpush1.msra.mxu0 0.0
    %543 = vmatprep.subr.mxu0 0.0
    %544 = vmatpush1.msra.mxu0 0.0
    %545 = vmatprep.subr.mxu0 %v507
    %546 = vmatpush1.msra.mxu0 %v504
    %547 = vmatprep.subr.mxu0 0.0
    %548 = vmatpush2.msra.mxu0 0.0
    %549 = vmatprep.subr.mxu0 0.0
    %550 = vmatpush2.msra.mxu0 0.0
    %551 = vmatprep.subr.mxu0 0.0
    %552 = vmatpush2.msra.mxu0 0.0
    %553 = vmatprep.subr.mxu0 0.0
    %554 = vmatpush2.msra.mxu0 0.0
    %555 = vmatprep.subr.mxu0 0.0
    %556 = vmatpush2.msra.mxu0 0.0
    %557 = vmatprep.subr.mxu0 0.0
    %558 = vmatpush2.msra.mxu0 0.0
    %559 = vmatprep.subr.mxu0 0.0
    %560 = vmatpush2.msra.mxu0 0.0
    %561 = vmatprep.subr.mxu0 0.0
    %562 = vmatpush2.msra.mxu0 0.0
    %563 = vmatprep.subr.mxu0 0.0
    %564 = vmatpush2.msra.mxu0 0.0
    %565 = vmatprep.subr.mxu0 0.0
    %566 = vmatpush2.msra.mxu0 0.0
    %567 = vmatprep.subr.mxu0 0.0
    %568 = vmatpush2.msra.mxu0 0.0
    %569 = vmatprep.subr.mxu0 0.0
    %570 = vmatpush2.msra.mxu0 0.0
    %571 = vmatprep.subr.mxu0 0.0
    %572 = vmatpush2.msra.mxu0 0.0
    %573 = vmatprep.subr.mxu0 0.0
    %574 = vmatpush2.msra.mxu0 0.0
    %575 = vmatprep.subr.mxu0 0.0
    %576 = vmatpush2.msra.mxu0 0.0
    %577 = vmatprep.subr.mxu0 0.0
    %578 = vmatpush2.msra.mxu0 0.0
    %579 = vmatprep.mubr.f32.mxu0 0.0
    %580 = vmatmul.mubr.f32.gmra.mxu0 %v501
    %v581 = vpop.f32.mrf.mxu0
    %v582 = vadd.f32 0.0, %v581
    %v583 = vpop.f32.mrf.mxu0
    %v584 = vadd.f32 0.0, %v583
    %585 = vdwg.mxu0
    %586 = vmatprep.subr.mxu0 0.0
    %587 = vmatpush1.msra.mxu0 0.0
    %588 = vmatprep.subr.mxu0 0.0
    %589 = vmatpush1.msra.mxu0 0.0
    %590 = vmatprep.subr.mxu0 0.0
    %591 = vmatpush1.msra.mxu0 0.0
    %592 = vmatprep.subr.mxu0 0.0
    %593 = vmatpush1.msra.mxu0 0.0
    %594 = vmatprep.subr.mxu0 0.0
    %595 = vmatpush1.msra.mxu0 0.0
    %596 = vmatprep.subr.mxu0 0.0
    %597 = vmatpush1.msra.mxu0 0.0
    %598 = vmatprep.subr.mxu0 0.0
    %599 = vmatpush1.msra.mxu0 0.0
    %600 = vmatprep.subr.mxu0 0.0
    %601 = vmatpush1.msra.mxu0 0.0
    %602 = vmatprep.subr.mxu0 0.0
    %603 = vmatpush1.msra.mxu0 0.0
    %604 = vmatprep.subr.mxu0 0.0
    %605 = vmatpush1.msra.mxu0 0.0
    %606 = vmatprep.subr.mxu0 0.0
    %607 = vmatpush1.msra.mxu0 0.0
    %608 = vmatprep.subr.mxu0 0.0
    %609 = vmatpush1.msra.mxu0 0.0
    %610 = vmatprep.subr.mxu0 0.0
    %611 = vmatpush1.msra.mxu0 0.0
    %612 = vmatprep.subr.mxu0 0.0
    %613 = vmatpush1.msra.mxu0 0.0
    %614 = vmatprep.subr.mxu0 0.0
    %615 = vmatpush1.msra.mxu0 0.0
    %616 = vmatprep.subr.mxu0 %v513
    %617 = vmatpush1.msra.mxu0 %v510
    %618 = vmatprep.subr.mxu0 0.0
    %619 = vmatpush2.msra.mxu0 0.0
    %620 = vmatprep.subr.mxu0 0.0
    %621 = vmatpush2.msra.mxu0 0.0
    %622 = vmatprep.subr.mxu0 0.0
    %623 = vmatpush2.msra.mxu0 0.0
    %624 = vmatprep.subr.mxu0 0.0
    %625 = vmatpush2.msra.mxu0 0.0
    %626 = vmatprep.subr.mxu0 0.0
    %627 = vmatpush2.msra.mxu0 0.0
    %628 = vmatprep.subr.mxu0 0.0
    %629 = vmatpush2.msra.mxu0 0.0
    %630 = vmatprep.subr.mxu0 0.0
    %631 = vmatpush2.msra.mxu0 0.0
    %632 = vmatprep.subr.mxu0 0.0
    %633 = vmatpush2.msra.mxu0 0.0
    %634 = vmatprep.subr.mxu0 0.0
    %635 = vmatpush2.msra.mxu0 0.0
    %636 = vmatprep.subr.mxu0 0.0
    %637 = vmatpush2.msra.mxu0 0.0
    %638 = vmatprep.subr.mxu0 0.0
    %639 = vmatpush2.msra.mxu0 0.0
    %640 = vmatprep.subr.mxu0 0.0
    %641 = vmatpush2.msra.mxu0 0.0
    %642 = vmatprep.subr.mxu0 0.0
    %643 = vmatpush2.msra.mxu0 0.0
    %644 = vmatprep.subr.mxu0 0.0
    %645 = vmatpush2.msra.mxu0 0.0
    %646 = vmatprep.subr.mxu0 0.0
    %647 = vmatpush2.msra.mxu0 0.0
    %648 = vmatprep.subr.mxu0 0.0
    %649 = vmatpush2.msra.mxu0 0.0
    %650 = vmatprep.mubr.f32.mxu0 0.0
    %651 = vmatmul.mubr.f32.gmra.mxu0 %v501
    %v652 = vpop.f32.mrf.mxu0
    %v653 = vadd.f32 0.0, %v652
    %v654 = vpop.f32.mrf.mxu0
    %v655 = vadd.f32 0.0, %v654
    %656 = vdwg.mxu0
    %v657 = vadd.f32 %v455, %v582
    %v658 = vadd.f32 %v456, %v584
    %v659 = vadd.f32 %v457, %v653
    %v660 = vadd.f32 %v458, %v655
    %661 = vrot.lane.b32.xlu0 %v36, 1
    %v662 = vpop.permute.xlu0 %661
    %663 = vrot.lane.b32.xlu0 %v37, 1
    %v664 = vpop.permute.xlu0 %663
    %665 = vrot.lane.b32.xlu0 %v42, 1
    %v666 = vpop.permute.xlu0 %665
    %667 = vrot.lane.b32.xlu0 %v43, 1
    %v668 = vpop.permute.xlu0 %667
    %vm669 = vcmp.lt.s32.totalorder %v61, 1
    %v670 = vsel %vm669, %v666, %v668
    %v671 = vsel %vm669, %v664, %v666
    %v672 = vsel %vm669, %v662, %v664
    %v673 = vsel %vm669, %v668, %v662
    %s674 = scalar_lea.vmem [#allocation4], 3
    %v675 = vld [vmem:[%s674] ss:$8 sm:$0xf]
    %v677 = vlaneseq
    %v678 = vshrl.u32 %v677, 7
    %v679 = vsub.s32 0, %v678
    %v680 = vrot.slane %v675, %v679
    %v681 = vlaneseq
    %v682 = vshrl.u32 %v681, 7
    %v683 = vsub.s32 1, %v682
    %v684 = vrot.slane %v675, %v683
    %v685 = vlaneseq
    %v686 = vshrl.u32 %v685, 7
    %v687 = vsub.s32 2, %v686
    %v688 = vrot.slane %v675, %v687
    %v689 = vlaneseq
    %v690 = vshrl.u32 %v689, 7
    %v691 = vsub.s32 3, %v690
    %v692 = vrot.slane %v675, %v691
    %v697 = vmul.f32 %v673, %v680
    %v698 = vmul.f32 %v672, %v684
    %v699 = vmul.f32 %v671, %v688
    %v700 = vmul.f32 %v670, %v692
    %v701 = vld [vmem:[%s3 + $0x18] sm:$0xff]
    %v703 = vsel %vm94, %v701, 0
    %v706 = vsel %vm98, %v697, 0
    %v709 = vsel %vm98, %v698, 0
    %v712 = vsel %vm98, %v699, 0
    %v715 = vsel %vm98, %v700, 0
    %717 = vmatprep.subr.mxu0 0.0
    %718 = vmatpush1.msra.mxu0 0.0
    %719 = vmatprep.subr.mxu0 0.0
    %720 = vmatpush1.msra.mxu0 0.0
    %721 = vmatprep.subr.mxu0 0.0
    %722 = vmatpush1.msra.mxu0 0.0
    %723 = vmatprep.subr.mxu0 0.0
    %724 = vmatpush1.msra.mxu0 0.0
    %725 = vmatprep.subr.mxu0 0.0
    %726 = vmatpush1.msra.mxu0 0.0
    %727 = vmatprep.subr.mxu0 0.0
    %728 = vmatpush1.msra.mxu0 0.0
    %729 = vmatprep.subr.mxu0 0.0
    %730 = vmatpush1.msra.mxu0 0.0
    %731 = vmatprep.subr.mxu0 0.0
    %732 = vmatpush1.msra.mxu0 0.0
    %733 = vmatprep.subr.mxu0 0.0
    %734 = vmatpush1.msra.mxu0 0.0
    %735 = vmatprep.subr.mxu0 0.0
    %736 = vmatpush1.msra.mxu0 0.0
    %737 = vmatprep.subr.mxu0 0.0
    %738 = vmatpush1.msra.mxu0 0.0
    %739 = vmatprep.subr.mxu0 0.0
    %740 = vmatpush1.msra.mxu0 0.0
    %741 = vmatprep.subr.mxu0 0.0
    %742 = vmatpush1.msra.mxu0 0.0
    %743 = vmatprep.subr.mxu0 0.0
    %744 = vmatpush1.msra.mxu0 0.0
    %745 = vmatprep.subr.mxu0 0.0
    %746 = vmatpush1.msra.mxu0 0.0
    %747 = vmatprep.subr.mxu0 %v709
    %748 = vmatpush1.msra.mxu0 %v706
    %749 = vmatprep.subr.mxu0 0.0
    %750 = vmatpush2.msra.mxu0 0.0
    %751 = vmatprep.subr.mxu0 0.0
    %752 = vmatpush2.msra.mxu0 0.0
    %753 = vmatprep.subr.mxu0 0.0
    %754 = vmatpush2.msra.mxu0 0.0
    %755 = vmatprep.subr.mxu0 0.0
    %756 = vmatpush2.msra.mxu0 0.0
    %757 = vmatprep.subr.mxu0 0.0
    %758 = vmatpush2.msra.mxu0 0.0
    %759 = vmatprep.subr.mxu0 0.0
    %760 = vmatpush2.msra.mxu0 0.0
    %761 = vmatprep.subr.mxu0 0.0
    %762 = vmatpush2.msra.mxu0 0.0
    %763 = vmatprep.subr.mxu0 0.0
    %764 = vmatpush2.msra.mxu0 0.0
    %765 = vmatprep.subr.mxu0 0.0
    %766 = vmatpush2.msra.mxu0 0.0
    %767 = vmatprep.subr.mxu0 0.0
    %768 = vmatpush2.msra.mxu0 0.0
    %769 = vmatprep.subr.mxu0 0.0
    %770 = vmatpush2.msra.mxu0 0.0
    %771 = vmatprep.subr.mxu0 0.0
    %772 = vmatpush2.msra.mxu0 0.0
    %773 = vmatprep.subr.mxu0 0.0
    %774 = vmatpush2.msra.mxu0 0.0
    %775 = vmatprep.subr.mxu0 0.0
    %776 = vmatpush2.msra.mxu0 0.0
    %777 = vmatprep.subr.mxu0 0.0
    %778 = vmatpush2.msra.mxu0 0.0
    %779 = vmatprep.subr.mxu0 0.0
    %780 = vmatpush2.msra.mxu0 0.0
    %781 = vmatprep.mubr.f32.mxu0 0.0
    %782 = vmatmul.mubr.f32.gmra.mxu0 %v703
    %v783 = vpop.f32.mrf.mxu0
    %v784 = vadd.f32 0.0, %v783
    %v785 = vpop.f32.mrf.mxu0
    %v786 = vadd.f32 0.0, %v785
    %787 = vdwg.mxu0
    %788 = vmatprep.subr.mxu0 0.0
    %789 = vmatpush1.msra.mxu0 0.0
    %790 = vmatprep.subr.mxu0 0.0
    %791 = vmatpush1.msra.mxu0 0.0
    %792 = vmatprep.subr.mxu0 0.0
    %793 = vmatpush1.msra.mxu0 0.0
    %794 = vmatprep.subr.mxu0 0.0
    %795 = vmatpush1.msra.mxu0 0.0
    %796 = vmatprep.subr.mxu0 0.0
    %797 = vmatpush1.msra.mxu0 0.0
    %798 = vmatprep.subr.mxu0 0.0
    %799 = vmatpush1.msra.mxu0 0.0
    %800 = vmatprep.subr.mxu0 0.0
    %801 = vmatpush1.msra.mxu0 0.0
    %802 = vmatprep.subr.mxu0 0.0
    %803 = vmatpush1.msra.mxu0 0.0
    %804 = vmatprep.subr.mxu0 0.0
    %805 = vmatpush1.msra.mxu0 0.0
    %806 = vmatprep.subr.mxu0 0.0
    %807 = vmatpush1.msra.mxu0 0.0
    %808 = vmatprep.subr.mxu0 0.0
    %809 = vmatpush1.msra.mxu0 0.0
    %810 = vmatprep.subr.mxu0 0.0
    %811 = vmatpush1.msra.mxu0 0.0
    %812 = vmatprep.subr.mxu0 0.0
    %813 = vmatpush1.msra.mxu0 0.0
    %814 = vmatprep.subr.mxu0 0.0
    %815 = vmatpush1.msra.mxu0 0.0
    %816 = vmatprep.subr.mxu0 0.0
    %817 = vmatpush1.msra.mxu0 0.0
    %818 = vmatprep.subr.mxu0 %v715
    %819 = vmatpush1.msra.mxu0 %v712
    %820 = vmatprep.subr.mxu0 0.0
    %821 = vmatpush2.msra.mxu0 0.0
    %822 = vmatprep.subr.mxu0 0.0
    %823 = vmatpush2.msra.mxu0 0.0
    %824 = vmatprep.subr.mxu0 0.0
    %825 = vmatpush2.msra.mxu0 0.0
    %826 = vmatprep.subr.mxu0 0.0
    %827 = vmatpush2.msra.mxu0 0.0
    %828 = vmatprep.subr.mxu0 0.0
    %829 = vmatpush2.msra.mxu0 0.0
    %830 = vmatprep.subr.mxu0 0.0
    %831 = vmatpush2.msra.mxu0 0.0
    %832 = vmatprep.subr.mxu0 0.0
    %833 = vmatpush2.msra.mxu0 0.0
    %834 = vmatprep.subr.mxu0 0.0
    %835 = vmatpush2.msra.mxu0 0.0
    %836 = vmatprep.subr.mxu0 0.0
    %837 = vmatpush2.msra.mxu0 0.0
    %838 = vmatprep.subr.mxu0 0.0
    %839 = vmatpush2.msra.mxu0 0.0
    %840 = vmatprep.subr.mxu0 0.0
    %841 = vmatpush2.msra.mxu0 0.0
    %842 = vmatprep.subr.mxu0 0.0
    %843 = vmatpush2.msra.mxu0 0.0
    %844 = vmatprep.subr.mxu0 0.0
    %845 = vmatpush2.msra.mxu0 0.0
    %846 = vmatprep.subr.mxu0 0.0
    %847 = vmatpush2.msra.mxu0 0.0
    %848 = vmatprep.subr.mxu0 0.0
    %849 = vmatpush2.msra.mxu0 0.0
    %850 = vmatprep.subr.mxu0 0.0
    %851 = vmatpush2.msra.mxu0 0.0
    %852 = vmatprep.mubr.f32.mxu0 0.0
    %853 = vmatmul.mubr.f32.gmra.mxu0 %v703
    %v854 = vpop.f32.mrf.mxu0
    %v855 = vadd.f32 0.0, %v854
    %v856 = vpop.f32.mrf.mxu0
    %v857 = vadd.f32 0.0, %v856
    %858 = vdwg.mxu0
    %v859 = vadd.f32 %v657, %v784
    %v860 = vadd.f32 %v658, %v786
    %v861 = vadd.f32 %v659, %v855
    %v862 = vadd.f32 %v660, %v857
    %v863 = vld [vmem:[%s3 + $0x20] sm:$0xff]
    %v865 = vsel %vm94, %v863, 0
    %v868 = vsel %vm98, %v36, 0
    %v871 = vsel %vm98, %v37, 0
    %v873 = vsel %vm98, %v42, 0
    %v875 = vsel %vm98, %v43, 0
    %877 = vmatprep.subr.mxu0 0.0
    %878 = vmatpush1.msra.mxu0 0.0
    %879 = vmatprep.subr.mxu0 0.0
    %880 = vmatpush1.msra.mxu0 0.0
    %881 = vmatprep.subr.mxu0 0.0
    %882 = vmatpush1.msra.mxu0 0.0
    %883 = vmatprep.subr.mxu0 0.0
    %884 = vmatpush1.msra.mxu0 0.0
    %885 = vmatprep.subr.mxu0 0.0
    %886 = vmatpush1.msra.mxu0 0.0
    %887 = vmatprep.subr.mxu0 0.0
    %888 = vmatpush1.msra.mxu0 0.0
    %889 = vmatprep.subr.mxu0 0.0
    %890 = vmatpush1.msra.mxu0 0.0
    %891 = vmatprep.subr.mxu0 0.0
    %892 = vmatpush1.msra.mxu0 0.0
    %893 = vmatprep.subr.mxu0 0.0
    %894 = vmatpush1.msra.mxu0 0.0
    %895 = vmatprep.subr.mxu0 0.0
    %896 = vmatpush1.msra.mxu0 0.0
    %897 = vmatprep.subr.mxu0 0.0
    %898 = vmatpush1.msra.mxu0 0.0
    %899 = vmatprep.subr.mxu0 0.0
    %900 = vmatpush1.msra.mxu0 0.0
    %901 = vmatprep.subr.mxu0 0.0
    %902 = vmatpush1.msra.mxu0 0.0
    %903 = vmatprep.subr.mxu0 0.0
    %904 = vmatpush1.msra.mxu0 0.0
    %905 = vmatprep.subr.mxu0 0.0
    %906 = vmatpush1.msra.mxu0 0.0
    %907 = vmatprep.subr.mxu0 %v871
    %908 = vmatpush1.msra.mxu0 %v868
    %909 = vmatprep.subr.mxu0 0.0
    %910 = vmatpush2.msra.mxu0 0.0
    %911 = vmatprep.subr.mxu0 0.0
    %912 = vmatpush2.msra.mxu0 0.0
    %913 = vmatprep.subr.mxu0 0.0
    %914 = vmatpush2.msra.mxu0 0.0
    %915 = vmatprep.subr.mxu0 0.0
    %916 = vmatpush2.msra.mxu0 0.0
    %917 = vmatprep.subr.mxu0 0.0
    %918 = vmatpush2.msra.mxu0 0.0
    %919 = vmatprep.subr.mxu0 0.0
    %920 = vmatpush2.msra.mxu0 0.0
    %921 = vmatprep.subr.mxu0 0.0
    %922 = vmatpush2.msra.mxu0 0.0
    %923 = vmatprep.subr.mxu0 0.0
    %924 = vmatpush2.msra.mxu0 0.0
    %925 = vmatprep.subr.mxu0 0.0
    %926 = vmatpush2.msra.mxu0 0.0
    %927 = vmatprep.subr.mxu0 0.0
    %928 = vmatpush2.msra.mxu0 0.0
    %929 = vmatprep.subr.mxu0 0.0
    %930 = vmatpush2.msra.mxu0 0.0
    %931 = vmatprep.subr.mxu0 0.0
    %932 = vmatpush2.msra.mxu0 0.0
    %933 = vmatprep.subr.mxu0 0.0
    %934 = vmatpush2.msra.mxu0 0.0
    %935 = vmatprep.subr.mxu0 0.0
    %936 = vmatpush2.msra.mxu0 0.0
    %937 = vmatprep.subr.mxu0 0.0
    %938 = vmatpush2.msra.mxu0 0.0
    %939 = vmatprep.subr.mxu0 0.0
    %940 = vmatpush2.msra.mxu0 0.0
    %941 = vmatprep.mubr.f32.mxu0 0.0
    %942 = vmatmul.mubr.f32.gmra.mxu0 %v865
    %v943 = vpop.f32.mrf.mxu0
    %v944 = vadd.f32 0.0, %v943
    %v945 = vpop.f32.mrf.mxu0
    %v946 = vadd.f32 0.0, %v945
    %947 = vdwg.mxu0
    %948 = vmatprep.subr.mxu0 0.0
    %949 = vmatpush1.msra.mxu0 0.0
    %950 = vmatprep.subr.mxu0 0.0
    %951 = vmatpush1.msra.mxu0 0.0
    %952 = vmatprep.subr.mxu0 0.0
    %953 = vmatpush1.msra.mxu0 0.0
    %954 = vmatprep.subr.mxu0 0.0
    %955 = vmatpush1.msra.mxu0 0.0
    %956 = vmatprep.subr.mxu0 0.0
    %957 = vmatpush1.msra.mxu0 0.0
    %958 = vmatprep.subr.mxu0 0.0
    %959 = vmatpush1.msra.mxu0 0.0
    %960 = vmatprep.subr.mxu0 0.0
    %961 = vmatpush1.msra.mxu0 0.0
    %962 = vmatprep.subr.mxu0 0.0
    %963 = vmatpush1.msra.mxu0 0.0
    %964 = vmatprep.subr.mxu0 0.0
    %965 = vmatpush1.msra.mxu0 0.0
    %966 = vmatprep.subr.mxu0 0.0
    %967 = vmatpush1.msra.mxu0 0.0
    %968 = vmatprep.subr.mxu0 0.0
    %969 = vmatpush1.msra.mxu0 0.0
    %970 = vmatprep.subr.mxu0 0.0
    %971 = vmatpush1.msra.mxu0 0.0
    %972 = vmatprep.subr.mxu0 0.0
    %973 = vmatpush1.msra.mxu0 0.0
    %974 = vmatprep.subr.mxu0 0.0
    %975 = vmatpush1.msra.mxu0 0.0
    %976 = vmatprep.subr.mxu0 0.0
    %977 = vmatpush1.msra.mxu0 0.0
    %978 = vmatprep.subr.mxu0 %v875
    %979 = vmatpush1.msra.mxu0 %v873
    %980 = vmatprep.subr.mxu0 0.0
    %981 = vmatpush2.msra.mxu0 0.0
    %982 = vmatprep.subr.mxu0 0.0
    %983 = vmatpush2.msra.mxu0 0.0
    %984 = vmatprep.subr.mxu0 0.0
    %985 = vmatpush2.msra.mxu0 0.0
    %986 = vmatprep.subr.mxu0 0.0
    %987 = vmatpush2.msra.mxu0 0.0
    %988 = vmatprep.subr.mxu0 0.0
    %989 = vmatpush2.msra.mxu0 0.0
    %990 = vmatprep.subr.mxu0 0.0
    %991 = vmatpush2.msra.mxu0 0.0
    %992 = vmatprep.subr.mxu0 0.0
    %993 = vmatpush2.msra.mxu0 0.0
    %994 = vmatprep.subr.mxu0 0.0
    %995 = vmatpush2.msra.mxu0 0.0
    %996 = vmatprep.subr.mxu0 0.0
    %997 = vmatpush2.msra.mxu0 0.0
    %998 = vmatprep.subr.mxu0 0.0
    %999 = vmatpush2.msra.mxu0 0.0
    %1000 = vmatprep.subr.mxu0 0.0
    %1001 = vmatpush2.msra.mxu0 0.0
    %1002 = vmatprep.subr.mxu0 0.0
    %1003 = vmatpush2.msra.mxu0 0.0
    %1004 = vmatprep.subr.mxu0 0.0
    %1005 = vmatpush2.msra.mxu0 0.0
    %1006 = vmatprep.subr.mxu0 0.0
    %1007 = vmatpush2.msra.mxu0 0.0
    %1008 = vmatprep.subr.mxu0 0.0
    %1009 = vmatpush2.msra.mxu0 0.0
    %1010 = vmatprep.subr.mxu0 0.0
    %1011 = vmatpush2.msra.mxu0 0.0
    %1012 = vmatprep.mubr.f32.mxu0 0.0
    %1013 = vmatmul.mubr.f32.gmra.mxu0 %v865
    %v1014 = vpop.f32.mrf.mxu0
    %v1015 = vadd.f32 0.0, %v1014
    %v1016 = vpop.f32.mrf.mxu0
    %v1017 = vadd.f32 0.0, %v1016
    %1018 = vdwg.mxu0
    %v1019 = vadd.f32 %v859, %v944
    %v1020 = vadd.f32 %v860, %v946
    %v1021 = vadd.f32 %v861, %v1015
    %v1022 = vadd.f32 %v862, %v1017
    %1023 = vrot.lane.b32.xlu0 %v36, 127
    %v1024 = vpop.permute.xlu0 %1023
    %1025 = vrot.lane.b32.xlu0 %v37, 127
    %v1026 = vpop.permute.xlu0 %1025
    %1027 = vrot.lane.b32.xlu0 %v42, 127
    %v1028 = vpop.permute.xlu0 %1027
    %1029 = vrot.lane.b32.xlu0 %v43, 127
    %v1030 = vpop.permute.xlu0 %1029
    %vm1031 = vcmp.lt.s32.totalorder %v61, 127
    %v1032 = vsel %vm1031, %v1028, %v1030
    %v1033 = vsel %vm1031, %v1026, %v1028
    %v1034 = vsel %vm1031, %v1024, %v1026
    %v1035 = vsel %vm1031, %v1030, %v1024
    %s1036 = scalar_lea.vmem [#allocation4], 5
    %v1037 = vld [vmem:[%s1036] ss:$8 sm:$0xf]
    %v1039 = vlaneseq
    %v1040 = vshrl.u32 %v1039, 7
    %v1041 = vsub.s32 0, %v1040
    %v1042 = vrot.slane %v1037, %v1041
    %v1043 = vlaneseq
    %v1044 = vshrl.u32 %v1043, 7
    %v1045 = vsub.s32 1, %v1044
    %v1046 = vrot.slane %v1037, %v1045
    %v1047 = vlaneseq
    %v1048 = vshrl.u32 %v1047, 7
    %v1049 = vsub.s32 2, %v1048
    %v1050 = vrot.slane %v1037, %v1049
    %v1051 = vlaneseq
    %v1052 = vshrl.u32 %v1051, 7
    %v1053 = vsub.s32 3, %v1052
    %v1054 = vrot.slane %v1037, %v1053
    %v1059 = vmul.f32 %v1034, %v1042
    %v1060 = vmul.f32 %v1033, %v1046
    %v1061 = vmul.f32 %v1032, %v1050
    %v1062 = vmul.f32 %v1035, %v1054
    %v1063 = vld [vmem:[%s3 + $0x28] sm:$0xff]
    %v1065 = vsel %vm94, %v1063, 0
    %v1068 = vsel %vm98, %v1059, 0
    %v1071 = vsel %vm98, %v1060, 0
    %v1074 = vsel %vm98, %v1061, 0
    %v1077 = vsel %vm98, %v1062, 0
    %1079 = vmatprep.subr.mxu0 0.0
    %1080 = vmatpush1.msra.mxu0 0.0
    %1081 = vmatprep.subr.mxu0 0.0
    %1082 = vmatpush1.msra.mxu0 0.0
    %1083 = vmatprep.subr.mxu0 0.0
    %1084 = vmatpush1.msra.mxu0 0.0
    %1085 = vmatprep.subr.mxu0 0.0
    %1086 = vmatpush1.msra.mxu0 0.0
    %1087 = vmatprep.subr.mxu0 0.0
    %1088 = vmatpush1.msra.mxu0 0.0
    %1089 = vmatprep.subr.mxu0 0.0
    %1090 = vmatpush1.msra.mxu0 0.0
    %1091 = vmatprep.subr.mxu0 0.0
    %1092 = vmatpush1.msra.mxu0 0.0
    %1093 = vmatprep.subr.mxu0 0.0
    %1094 = vmatpush1.msra.mxu0 0.0
    %1095 = vmatprep.subr.mxu0 0.0
    %1096 = vmatpush1.msra.mxu0 0.0
    %1097 = vmatprep.subr.mxu0 0.0
    %1098 = vmatpush1.msra.mxu0 0.0
    %1099 = vmatprep.subr.mxu0 0.0
    %1100 = vmatpush1.msra.mxu0 0.0
    %1101 = vmatprep.subr.mxu0 0.0
    %1102 = vmatpush1.msra.mxu0 0.0
    %1103 = vmatprep.subr.mxu0 0.0
    %1104 = vmatpush1.msra.mxu0 0.0
    %1105 = vmatprep.subr.mxu0 0.0
    %1106 = vmatpush1.msra.mxu0 0.0
    %1107 = vmatprep.subr.mxu0 0.0
    %1108 = vmatpush1.msra.mxu0 0.0
    %1109 = vmatprep.subr.mxu0 %v1071
    %1110 = vmatpush1.msra.mxu0 %v1068
    %1111 = vmatprep.subr.mxu0 0.0
    %1112 = vmatpush2.msra.mxu0 0.0
    %1113 = vmatprep.subr.mxu0 0.0
    %1114 = vmatpush2.msra.mxu0 0.0
    %1115 = vmatprep.subr.mxu0 0.0
    %1116 = vmatpush2.msra.mxu0 0.0
    %1117 = vmatprep.subr.mxu0 0.0
    %1118 = vmatpush2.msra.mxu0 0.0
    %1119 = vmatprep.subr.mxu0 0.0
    %1120 = vmatpush2.msra.mxu0 0.0
    %1121 = vmatprep.subr.mxu0 0.0
    %1122 = vmatpush2.msra.mxu0 0.0
    %1123 = vmatprep.subr.mxu0 0.0
    %1124 = vmatpush2.msra.mxu0 0.0
    %1125 = vmatprep.subr.mxu0 0.0
    %1126 = vmatpush2.msra.mxu0 0.0
    %1127 = vmatprep.subr.mxu0 0.0
    %1128 = vmatpush2.msra.mxu0 0.0
    %1129 = vmatprep.subr.mxu0 0.0
    %1130 = vmatpush2.msra.mxu0 0.0
    %1131 = vmatprep.subr.mxu0 0.0
    %1132 = vmatpush2.msra.mxu0 0.0
    %1133 = vmatprep.subr.mxu0 0.0
    %1134 = vmatpush2.msra.mxu0 0.0
    %1135 = vmatprep.subr.mxu0 0.0
    %1136 = vmatpush2.msra.mxu0 0.0
    %1137 = vmatprep.subr.mxu0 0.0
    %1138 = vmatpush2.msra.mxu0 0.0
    %1139 = vmatprep.subr.mxu0 0.0
    %1140 = vmatpush2.msra.mxu0 0.0
    %1141 = vmatprep.subr.mxu0 0.0
    %1142 = vmatpush2.msra.mxu0 0.0
    %1143 = vmatprep.mubr.f32.mxu0 0.0
    %1144 = vmatmul.mubr.f32.gmra.mxu0 %v1065
    %v1145 = vpop.f32.mrf.mxu0
    %v1146 = vadd.f32 0.0, %v1145
    %v1147 = vpop.f32.mrf.mxu0
    %v1148 = vadd.f32 0.0, %v1147
    %1149 = vdwg.mxu0
    %1150 = vmatprep.subr.mxu0 0.0
    %1151 = vmatpush1.msra.mxu0 0.0
    %1152 = vmatprep.subr.mxu0 0.0
    %1153 = vmatpush1.msra.mxu0 0.0
    %1154 = vmatprep.subr.mxu0 0.0
    %1155 = vmatpush1.msra.mxu0 0.0
    %1156 = vmatprep.subr.mxu0 0.0
    %1157 = vmatpush1.msra.mxu0 0.0
    %1158 = vmatprep.subr.mxu0 0.0
    %1159 = vmatpush1.msra.mxu0 0.0
    %1160 = vmatprep.subr.mxu0 0.0
    %1161 = vmatpush1.msra.mxu0 0.0
    %1162 = vmatprep.subr.mxu0 0.0
    %1163 = vmatpush1.msra.mxu0 0.0
    %1164 = vmatprep.subr.mxu0 0.0
    %1165 = vmatpush1.msra.mxu0 0.0
    %1166 = vmatprep.subr.mxu0 0.0
    %1167 = vmatpush1.msra.mxu0 0.0
    %1168 = vmatprep.subr.mxu0 0.0
    %1169 = vmatpush1.msra.mxu0 0.0
    %1170 = vmatprep.subr.mxu0 0.0
    %1171 = vmatpush1.msra.mxu0 0.0
    %1172 = vmatprep.subr.mxu0 0.0
    %1173 = vmatpush1.msra.mxu0 0.0
    %1174 = vmatprep.subr.mxu0 0.0
    %1175 = vmatpush1.msra.mxu0 0.0
    %1176 = vmatprep.subr.mxu0 0.0
    %1177 = vmatpush1.msra.mxu0 0.0
    %1178 = vmatprep.subr.mxu0 0.0
    %1179 = vmatpush1.msra.mxu0 0.0
    %1180 = vmatprep.subr.mxu0 %v1077
    %1181 = vmatpush1.msra.mxu0 %v1074
    %1182 = vmatprep.subr.mxu0 0.0
    %1183 = vmatpush2.msra.mxu0 0.0
    %1184 = vmatprep.subr.mxu0 0.0
    %1185 = vmatpush2.msra.mxu0 0.0
    %1186 = vmatprep.subr.mxu0 0.0
    %1187 = vmatpush2.msra.mxu0 0.0
    %1188 = vmatprep.subr.mxu0 0.0
    %1189 = vmatpush2.msra.mxu0 0.0
    %1190 = vmatprep.subr.mxu0 0.0
    %1191 = vmatpush2.msra.mxu0 0.0
    %1192 = vmatprep.subr.mxu0 0.0
    %1193 = vmatpush2.msra.mxu0 0.0
    %1194 = vmatprep.subr.mxu0 0.0
    %1195 = vmatpush2.msra.mxu0 0.0
    %1196 = vmatprep.subr.mxu0 0.0
    %1197 = vmatpush2.msra.mxu0 0.0
    %1198 = vmatprep.subr.mxu0 0.0
    %1199 = vmatpush2.msra.mxu0 0.0
    %1200 = vmatprep.subr.mxu0 0.0
    %1201 = vmatpush2.msra.mxu0 0.0
    %1202 = vmatprep.subr.mxu0 0.0
    %1203 = vmatpush2.msra.mxu0 0.0
    %1204 = vmatprep.subr.mxu0 0.0
    %1205 = vmatpush2.msra.mxu0 0.0
    %1206 = vmatprep.subr.mxu0 0.0
    %1207 = vmatpush2.msra.mxu0 0.0
    %1208 = vmatprep.subr.mxu0 0.0
    %1209 = vmatpush2.msra.mxu0 0.0
    %1210 = vmatprep.subr.mxu0 0.0
    %1211 = vmatpush2.msra.mxu0 0.0
    %1212 = vmatprep.subr.mxu0 0.0
    %1213 = vmatpush2.msra.mxu0 0.0
    %1214 = vmatprep.mubr.f32.mxu0 0.0
    %1215 = vmatmul.mubr.f32.gmra.mxu0 %v1065
    %v1216 = vpop.f32.mrf.mxu0
    %v1217 = vadd.f32 0.0, %v1216
    %v1218 = vpop.f32.mrf.mxu0
    %v1219 = vadd.f32 0.0, %v1218
    %1220 = vdwg.mxu0
    %v1221 = vadd.f32 %v1019, %v1146
    %v1222 = vadd.f32 %v1020, %v1148
    %v1223 = vadd.f32 %v1021, %v1217
    %v1224 = vadd.f32 %v1022, %v1219
    %1225 = vrot.lane.b32.xlu0 %v36, 113
    %v1226 = vpop.permute.xlu0 %1225
    %1227 = vrot.lane.b32.xlu0 %v37, 113
    %v1228 = vpop.permute.xlu0 %1227
    %1229 = vrot.lane.b32.xlu0 %v42, 113
    %v1230 = vpop.permute.xlu0 %1229
    %1231 = vrot.lane.b32.xlu0 %v43, 113
    %v1232 = vpop.permute.xlu0 %1231
    %vm1233 = vcmp.lt.s32.totalorder %v61, 113
    %v1234 = vsel %vm1233, %v1230, %v1232
    %v1235 = vsel %vm1233, %v1228, %v1230
    %v1236 = vsel %vm1233, %v1226, %v1228
    %v1237 = vsel %vm1233, %v1232, %v1226
    %s1238 = scalar_lea.vmem [#allocation4], 6
    %v1239 = vld [vmem:[%s1238] ss:$8 sm:$0xf]
    %v1241 = vlaneseq
    %v1242 = vshrl.u32 %v1241, 7
    %v1243 = vsub.s32 0, %v1242
    %v1244 = vrot.slane %v1239, %v1243
    %v1245 = vlaneseq
    %v1246 = vshrl.u32 %v1245, 7
    %v1247 = vsub.s32 1, %v1246
    %v1248 = vrot.slane %v1239, %v1247
    %v1249 = vlaneseq
    %v1250 = vshrl.u32 %v1249, 7
    %v1251 = vsub.s32 2, %v1250
    %v1252 = vrot.slane %v1239, %v1251
    %v1253 = vlaneseq
    %v1254 = vshrl.u32 %v1253, 7
    %v1255 = vsub.s32 3, %v1254
    %v1256 = vrot.slane %v1239, %v1255
    %v1261 = vmul.f32 %v1236, %v1244
    %v1262 = vmul.f32 %v1235, %v1248
    %v1263 = vmul.f32 %v1234, %v1252
    %v1264 = vmul.f32 %v1237, %v1256
    %v1265 = vld [vmem:[%s3 + $0x30] sm:$0xff]
    %v1267 = vsel %vm94, %v1265, 0
    %v1270 = vsel %vm98, %v1261, 0
    %v1273 = vsel %vm98, %v1262, 0
    %v1276 = vsel %vm98, %v1263, 0
    %v1279 = vsel %vm98, %v1264, 0
    %1281 = vmatprep.subr.mxu0 0.0
    %1282 = vmatpush1.msra.mxu0 0.0
    %1283 = vmatprep.subr.mxu0 0.0
    %1284 = vmatpush1.msra.mxu0 0.0
    %1285 = vmatprep.subr.mxu0 0.0
    %1286 = vmatpush1.msra.mxu0 0.0
    %1287 = vmatprep.subr.mxu0 0.0
    %1288 = vmatpush1.msra.mxu0 0.0
    %1289 = vmatprep.subr.mxu0 0.0
    %1290 = vmatpush1.msra.mxu0 0.0
    %1291 = vmatprep.subr.mxu0 0.0
    %1292 = vmatpush1.msra.mxu0 0.0
    %1293 = vmatprep.subr.mxu0 0.0
    %1294 = vmatpush1.msra.mxu0 0.0
    %1295 = vmatprep.subr.mxu0 0.0
    %1296 = vmatpush1.msra.mxu0 0.0
    %1297 = vmatprep.subr.mxu0 0.0
    %1298 = vmatpush1.msra.mxu0 0.0
    %1299 = vmatprep.subr.mxu0 0.0
    %1300 = vmatpush1.msra.mxu0 0.0
    %1301 = vmatprep.subr.mxu0 0.0
    %1302 = vmatpush1.msra.mxu0 0.0
    %1303 = vmatprep.subr.mxu0 0.0
    %1304 = vmatpush1.msra.mxu0 0.0
    %1305 = vmatprep.subr.mxu0 0.0
    %1306 = vmatpush1.msra.mxu0 0.0
    %1307 = vmatprep.subr.mxu0 0.0
    %1308 = vmatpush1.msra.mxu0 0.0
    %1309 = vmatprep.subr.mxu0 0.0
    %1310 = vmatpush1.msra.mxu0 0.0
    %1311 = vmatprep.subr.mxu0 %v1273
    %1312 = vmatpush1.msra.mxu0 %v1270
    %1313 = vmatprep.subr.mxu0 0.0
    %1314 = vmatpush2.msra.mxu0 0.0
    %1315 = vmatprep.subr.mxu0 0.0
    %1316 = vmatpush2.msra.mxu0 0.0
    %1317 = vmatprep.subr.mxu0 0.0
    %1318 = vmatpush2.msra.mxu0 0.0
    %1319 = vmatprep.subr.mxu0 0.0
    %1320 = vmatpush2.msra.mxu0 0.0
    %1321 = vmatprep.subr.mxu0 0.0
    %1322 = vmatpush2.msra.mxu0 0.0
    %1323 = vmatprep.subr.mxu0 0.0
    %1324 = vmatpush2.msra.mxu0 0.0
    %1325 = vmatprep.subr.mxu0 0.0
    %1326 = vmatpush2.msra.mxu0 0.0
    %1327 = vmatprep.subr.mxu0 0.0
    %1328 = vmatpush2.msra.mxu0 0.0
    %1329 = vmatprep.subr.mxu0 0.0
    %1330 = vmatpush2.msra.mxu0 0.0
    %1331 = vmatprep.subr.mxu0 0.0
    %1332 = vmatpush2.msra.mxu0 0.0
    %1333 = vmatprep.subr.mxu0 0.0
    %1334 = vmatpush2.msra.mxu0 0.0
    %1335 = vmatprep.subr.mxu0 0.0
    %1336 = vmatpush2.msra.mxu0 0.0
    %1337 = vmatprep.subr.mxu0 0.0
    %1338 = vmatpush2.msra.mxu0 0.0
    %1339 = vmatprep.subr.mxu0 0.0
    %1340 = vmatpush2.msra.mxu0 0.0
    %1341 = vmatprep.subr.mxu0 0.0
    %1342 = vmatpush2.msra.mxu0 0.0
    %1343 = vmatprep.subr.mxu0 0.0
    %1344 = vmatpush2.msra.mxu0 0.0
    %1345 = vmatprep.mubr.f32.mxu0 0.0
    %1346 = vmatmul.mubr.f32.gmra.mxu0 %v1267
    %v1347 = vpop.f32.mrf.mxu0
    %v1348 = vadd.f32 0.0, %v1347
    %v1349 = vpop.f32.mrf.mxu0
    %v1350 = vadd.f32 0.0, %v1349
    %1351 = vdwg.mxu0
    %1352 = vmatprep.subr.mxu0 0.0
    %1353 = vmatpush1.msra.mxu0 0.0
    %1354 = vmatprep.subr.mxu0 0.0
    %1355 = vmatpush1.msra.mxu0 0.0
    %1356 = vmatprep.subr.mxu0 0.0
    %1357 = vmatpush1.msra.mxu0 0.0
    %1358 = vmatprep.subr.mxu0 0.0
    %1359 = vmatpush1.msra.mxu0 0.0
    %1360 = vmatprep.subr.mxu0 0.0
    %1361 = vmatpush1.msra.mxu0 0.0
    %1362 = vmatprep.subr.mxu0 0.0
    %1363 = vmatpush1.msra.mxu0 0.0
    %1364 = vmatprep.subr.mxu0 0.0
    %1365 = vmatpush1.msra.mxu0 0.0
    %1366 = vmatprep.subr.mxu0 0.0
    %1367 = vmatpush1.msra.mxu0 0.0
    %1368 = vmatprep.subr.mxu0 0.0
    %1369 = vmatpush1.msra.mxu0 0.0
    %1370 = vmatprep.subr.mxu0 0.0
    %1371 = vmatpush1.msra.mxu0 0.0
    %1372 = vmatprep.subr.mxu0 0.0
    %1373 = vmatpush1.msra.mxu0 0.0
    %1374 = vmatprep.subr.mxu0 0.0
    %1375 = vmatpush1.msra.mxu0 0.0
    %1376 = vmatprep.subr.mxu0 0.0
    %1377 = vmatpush1.msra.mxu0 0.0
    %1378 = vmatprep.subr.mxu0 0.0
    %1379 = vmatpush1.msra.mxu0 0.0
    %1380 = vmatprep.subr.mxu0 0.0
    %1381 = vmatpush1.msra.mxu0 0.0
    %1382 = vmatprep.subr.mxu0 %v1279
    %1383 = vmatpush1.msra.mxu0 %v1276
    %1384 = vmatprep.subr.mxu0 0.0
    %1385 = vmatpush2.msra.mxu0 0.0
    %1386 = vmatprep.subr.mxu0 0.0
    %1387 = vmatpush2.msra.mxu0 0.0
    %1388 = vmatprep.subr.mxu0 0.0
    %1389 = vmatpush2.msra.mxu0 0.0
    %1390 = vmatprep.subr.mxu0 0.0
    %1391 = vmatpush2.msra.mxu0 0.0
    %1392 = vmatprep.subr.mxu0 0.0
    %1393 = vmatpush2.msra.mxu0 0.0
    %1394 = vmatprep.subr.mxu0 0.0
    %1395 = vmatpush2.msra.mxu0 0.0
    %1396 = vmatprep.subr.mxu0 0.0
    %1397 = vmatpush2.msra.mxu0 0.0
    %1398 = vmatprep.subr.mxu0 0.0
    %1399 = vmatpush2.msra.mxu0 0.0
    %1400 = vmatprep.subr.mxu0 0.0
    %1401 = vmatpush2.msra.mxu0 0.0
    %1402 = vmatprep.subr.mxu0 0.0
    %1403 = vmatpush2.msra.mxu0 0.0
    %1404 = vmatprep.subr.mxu0 0.0
    %1405 = vmatpush2.msra.mxu0 0.0
    %1406 = vmatprep.subr.mxu0 0.0
    %1407 = vmatpush2.msra.mxu0 0.0
    %1408 = vmatprep.subr.mxu0 0.0
    %1409 = vmatpush2.msra.mxu0 0.0
    %1410 = vmatprep.subr.mxu0 0.0
    %1411 = vmatpush2.msra.mxu0 0.0
    %1412 = vmatprep.subr.mxu0 0.0
    %1413 = vmatpush2.msra.mxu0 0.0
    %1414 = vmatprep.subr.mxu0 0.0
    %1415 = vmatpush2.msra.mxu0 0.0
    %1416 = vmatprep.mubr.f32.mxu0 0.0
    %1417 = vmatmul.mubr.f32.gmra.mxu0 %v1267
    %v1418 = vpop.f32.mrf.mxu0
    %v1419 = vadd.f32 0.0, %v1418
    %v1420 = vpop.f32.mrf.mxu0
    %v1421 = vadd.f32 0.0, %v1420
    %1422 = vdwg.mxu0
    %v1423 = vadd.f32 %v1221, %v1348
    %v1424 = vadd.f32 %v1222, %v1350
    %v1425 = vadd.f32 %v1223, %v1419
    %v1426 = vadd.f32 %v1224, %v1421
    %1427 = vrot.lane.b32.xlu0 %v36, 112
    %v1428 = vpop.permute.xlu0 %1427
    %1429 = vrot.lane.b32.xlu0 %v37, 112
    %v1430 = vpop.permute.xlu0 %1429
    %1431 = vrot.lane.b32.xlu0 %v42, 112
    %v1432 = vpop.permute.xlu0 %1431
    %1433 = vrot.lane.b32.xlu0 %v43, 112
    %v1434 = vpop.permute.xlu0 %1433
    %vm1435 = vcmp.lt.s32.totalorder %v61, 112
    %v1436 = vsel %vm1435, %v1432, %v1434
    %v1437 = vsel %vm1435, %v1430, %v1432
    %v1438 = vsel %vm1435, %v1428, %v1430
    %v1439 = vsel %vm1435, %v1434, %v1428
    %s1440 = scalar_lea.vmem [#allocation4], 7
    %v1441 = vld [vmem:[%s1440] ss:$8 sm:$0xf]
    %v1443 = vlaneseq
    %v1444 = vshrl.u32 %v1443, 7
    %v1445 = vsub.s32 0, %v1444
    %v1446 = vrot.slane %v1441, %v1445
    %v1447 = vlaneseq
    %v1448 = vshrl.u32 %v1447, 7
    %v1449 = vsub.s32 1, %v1448
    %v1450 = vrot.slane %v1441, %v1449
    %v1451 = vlaneseq
    %v1452 = vshrl.u32 %v1451, 7
    %v1453 = vsub.s32 2, %v1452
    %v1454 = vrot.slane %v1441, %v1453
    %v1455 = vlaneseq
    %v1456 = vshrl.u32 %v1455, 7
    %v1457 = vsub.s32 3, %v1456
    %v1458 = vrot.slane %v1441, %v1457
    %v1463 = vmul.f32 %v1438, %v1446
    %v1464 = vmul.f32 %v1437, %v1450
    %v1465 = vmul.f32 %v1436, %v1454
    %v1466 = vmul.f32 %v1439, %v1458
    %v1467 = vld [vmem:[%s3 + $0x38] sm:$0xff]
    %v1469 = vsel %vm94, %v1467, 0
    %v1472 = vsel %vm98, %v1463, 0
    %v1475 = vsel %vm98, %v1464, 0
    %v1478 = vsel %vm98, %v1465, 0
    %v1481 = vsel %vm98, %v1466, 0
    %1483 = vmatprep.subr.mxu0 0.0
    %1484 = vmatpush1.msra.mxu0 0.0
    %1485 = vmatprep.subr.mxu0 0.0
    %1486 = vmatpush1.msra.mxu0 0.0
    %1487 = vmatprep.subr.mxu0 0.0
    %1488 = vmatpush1.msra.mxu0 0.0
    %1489 = vmatprep.subr.mxu0 0.0
    %1490 = vmatpush1.msra.mxu0 0.0
    %1491 = vmatprep.subr.mxu0 0.0
    %1492 = vmatpush1.msra.mxu0 0.0
    %1493 = vmatprep.subr.mxu0 0.0
    %1494 = vmatpush1.msra.mxu0 0.0
    %1495 = vmatprep.subr.mxu0 0.0
    %1496 = vmatpush1.msra.mxu0 0.0
    %1497 = vmatprep.subr.mxu0 0.0
    %1498 = vmatpush1.msra.mxu0 0.0
    %1499 = vmatprep.subr.mxu0 0.0
    %1500 = vmatpush1.msra.mxu0 0.0
    %1501 = vmatprep.subr.mxu0 0.0
    %1502 = vmatpush1.msra.mxu0 0.0
    %1503 = vmatprep.subr.mxu0 0.0
    %1504 = vmatpush1.msra.mxu0 0.0
    %1505 = vmatprep.subr.mxu0 0.0
    %1506 = vmatpush1.msra.mxu0 0.0
    %1507 = vmatprep.subr.mxu0 0.0
    %1508 = vmatpush1.msra.mxu0 0.0
    %1509 = vmatprep.subr.mxu0 0.0
    %1510 = vmatpush1.msra.mxu0 0.0
    %1511 = vmatprep.subr.mxu0 0.0
    %1512 = vmatpush1.msra.mxu0 0.0
    %1513 = vmatprep.subr.mxu0 %v1475
    %1514 = vmatpush1.msra.mxu0 %v1472
    %1515 = vmatprep.subr.mxu0 0.0
    %1516 = vmatpush2.msra.mxu0 0.0
    %1517 = vmatprep.subr.mxu0 0.0
    %1518 = vmatpush2.msra.mxu0 0.0
    %1519 = vmatprep.subr.mxu0 0.0
    %1520 = vmatpush2.msra.mxu0 0.0
    %1521 = vmatprep.subr.mxu0 0.0
    %1522 = vmatpush2.msra.mxu0 0.0
    %1523 = vmatprep.subr.mxu0 0.0
    %1524 = vmatpush2.msra.mxu0 0.0
    %1525 = vmatprep.subr.mxu0 0.0
    %1526 = vmatpush2.msra.mxu0 0.0
    %1527 = vmatprep.subr.mxu0 0.0
    %1528 = vmatpush2.msra.mxu0 0.0
    %1529 = vmatprep.subr.mxu0 0.0
    %1530 = vmatpush2.msra.mxu0 0.0
    %1531 = vmatprep.subr.mxu0 0.0
    %1532 = vmatpush2.msra.mxu0 0.0
    %1533 = vmatprep.subr.mxu0 0.0
    %1534 = vmatpush2.msra.mxu0 0.0
    %1535 = vmatprep.subr.mxu0 0.0
    %1536 = vmatpush2.msra.mxu0 0.0
    %1537 = vmatprep.subr.mxu0 0.0
    %1538 = vmatpush2.msra.mxu0 0.0
    %1539 = vmatprep.subr.mxu0 0.0
    %1540 = vmatpush2.msra.mxu0 0.0
    %1541 = vmatprep.subr.mxu0 0.0
    %1542 = vmatpush2.msra.mxu0 0.0
    %1543 = vmatprep.subr.mxu0 0.0
    %1544 = vmatpush2.msra.mxu0 0.0
    %1545 = vmatprep.subr.mxu0 0.0
    %1546 = vmatpush2.msra.mxu0 0.0
    %1547 = vmatprep.mubr.f32.mxu0 0.0
    %1548 = vmatmul.mubr.f32.gmra.mxu0 %v1469
    %v1549 = vpop.f32.mrf.mxu0
    %v1550 = vadd.f32 0.0, %v1549
    %v1551 = vpop.f32.mrf.mxu0
    %v1552 = vadd.f32 0.0, %v1551
    %1553 = vdwg.mxu0
    %1554 = vmatprep.subr.mxu0 0.0
    %1555 = vmatpush1.msra.mxu0 0.0
    %1556 = vmatprep.subr.mxu0 0.0
    %1557 = vmatpush1.msra.mxu0 0.0
    %1558 = vmatprep.subr.mxu0 0.0
    %1559 = vmatpush1.msra.mxu0 0.0
    %1560 = vmatprep.subr.mxu0 0.0
    %1561 = vmatpush1.msra.mxu0 0.0
    %1562 = vmatprep.subr.mxu0 0.0
    %1563 = vmatpush1.msra.mxu0 0.0
    %1564 = vmatprep.subr.mxu0 0.0
    %1565 = vmatpush1.msra.mxu0 0.0
    %1566 = vmatprep.subr.mxu0 0.0
    %1567 = vmatpush1.msra.mxu0 0.0
    %1568 = vmatprep.subr.mxu0 0.0
    %1569 = vmatpush1.msra.mxu0 0.0
    %1570 = vmatprep.subr.mxu0 0.0
    %1571 = vmatpush1.msra.mxu0 0.0
    %1572 = vmatprep.subr.mxu0 0.0
    %1573 = vmatpush1.msra.mxu0 0.0
    %1574 = vmatprep.subr.mxu0 0.0
    %1575 = vmatpush1.msra.mxu0 0.0
    %1576 = vmatprep.subr.mxu0 0.0
    %1577 = vmatpush1.msra.mxu0 0.0
    %1578 = vmatprep.subr.mxu0 0.0
    %1579 = vmatpush1.msra.mxu0 0.0
    %1580 = vmatprep.subr.mxu0 0.0
    %1581 = vmatpush1.msra.mxu0 0.0
    %1582 = vmatprep.subr.mxu0 0.0
    %1583 = vmatpush1.msra.mxu0 0.0
    %1584 = vmatprep.subr.mxu0 %v1481
    %1585 = vmatpush1.msra.mxu0 %v1478
    %1586 = vmatprep.subr.mxu0 0.0
    %1587 = vmatpush2.msra.mxu0 0.0
    %1588 = vmatprep.subr.mxu0 0.0
    %1589 = vmatpush2.msra.mxu0 0.0
    %1590 = vmatprep.subr.mxu0 0.0
    %1591 = vmatpush2.msra.mxu0 0.0
    %1592 = vmatprep.subr.mxu0 0.0
    %1593 = vmatpush2.msra.mxu0 0.0
    %1594 = vmatprep.subr.mxu0 0.0
    %1595 = vmatpush2.msra.mxu0 0.0
    %1596 = vmatprep.subr.mxu0 0.0
    %1597 = vmatpush2.msra.mxu0 0.0
    %1598 = vmatprep.subr.mxu0 0.0
    %1599 = vmatpush2.msra.mxu0 0.0
    %1600 = vmatprep.subr.mxu0 0.0
    %1601 = vmatpush2.msra.mxu0 0.0
    %1602 = vmatprep.subr.mxu0 0.0
    %1603 = vmatpush2.msra.mxu0 0.0
    %1604 = vmatprep.subr.mxu0 0.0
    %1605 = vmatpush2.msra.mxu0 0.0
    %1606 = vmatprep.subr.mxu0 0.0
    %1607 = vmatpush2.msra.mxu0 0.0
    %1608 = vmatprep.subr.mxu0 0.0
    %1609 = vmatpush2.msra.mxu0 0.0
    %1610 = vmatprep.subr.mxu0 0.0
    %1611 = vmatpush2.msra.mxu0 0.0
    %1612 = vmatprep.subr.mxu0 0.0
    %1613 = vmatpush2.msra.mxu0 0.0
    %1614 = vmatprep.subr.mxu0 0.0
    %1615 = vmatpush2.msra.mxu0 0.0
    %1616 = vmatprep.subr.mxu0 0.0
    %1617 = vmatpush2.msra.mxu0 0.0
    %1618 = vmatprep.mubr.f32.mxu0 0.0
    %1619 = vmatmul.mubr.f32.gmra.mxu0 %v1469
    %v1620 = vpop.f32.mrf.mxu0
    %v1621 = vadd.f32 0.0, %v1620
    %v1622 = vpop.f32.mrf.mxu0
    %v1623 = vadd.f32 0.0, %v1622
    %1624 = vdwg.mxu0
    %v1625 = vadd.f32 %v1423, %v1550
    %v1626 = vadd.f32 %v1424, %v1552
    %v1627 = vadd.f32 %v1425, %v1621
    %v1628 = vadd.f32 %v1426, %v1623
    %1629 = vrot.lane.b32.xlu0 %v36, 111
    %v1630 = vpop.permute.xlu0 %1629
    %1631 = vrot.lane.b32.xlu0 %v37, 111
    %v1632 = vpop.permute.xlu0 %1631
    %1633 = vrot.lane.b32.xlu0 %v42, 111
    %v1634 = vpop.permute.xlu0 %1633
    %1635 = vrot.lane.b32.xlu0 %v43, 111
    %v1636 = vpop.permute.xlu0 %1635
    %vm1637 = vcmp.lt.s32.totalorder %v61, 111
    %v1638 = vsel %vm1637, %v1634, %v1636
    %v1639 = vsel %vm1637, %v1632, %v1634
    %v1640 = vsel %vm1637, %v1630, %v1632
    %v1641 = vsel %vm1637, %v1636, %v1630
    %s1642 = scalar_lea.vmem [#allocation4], 32
    %v1643 = vld [vmem:[%s1642] ss:$8 sm:$0xf]
    %v1645 = vlaneseq
    %v1646 = vshrl.u32 %v1645, 7
    %v1647 = vsub.s32 0, %v1646
    %v1648 = vrot.slane %v1643, %v1647
    %v1649 = vlaneseq
    %v1650 = vshrl.u32 %v1649, 7
    %v1651 = vsub.s32 1, %v1650
    %v1652 = vrot.slane %v1643, %v1651
    %v1653 = vlaneseq
    %v1654 = vshrl.u32 %v1653, 7
    %v1655 = vsub.s32 2, %v1654
    %v1656 = vrot.slane %v1643, %v1655
    %v1657 = vlaneseq
    %v1658 = vshrl.u32 %v1657, 7
    %v1659 = vsub.s32 3, %v1658
    %v1660 = vrot.slane %v1643, %v1659
    %v1665 = vmul.f32 %v1640, %v1648
    %v1666 = vmul.f32 %v1639, %v1652
    %v1667 = vmul.f32 %v1638, %v1656
    %v1668 = vmul.f32 %v1641, %v1660
    %v1669 = vld [vmem:[%s3 + $0x40] sm:$0xff]
    %v1671 = vsel %vm94, %v1669, 0
    %v1674 = vsel %vm98, %v1665, 0
    %v1677 = vsel %vm98, %v1666, 0
    %v1680 = vsel %vm98, %v1667, 0
    %v1683 = vsel %vm98, %v1668, 0
    %1685 = vmatprep.subr.mxu0 0.0
    %1686 = vmatpush1.msra.mxu0 0.0
    %1687 = vmatprep.subr.mxu0 0.0
    %1688 = vmatpush1.msra.mxu0 0.0
    %1689 = vmatprep.subr.mxu0 0.0
    %1690 = vmatpush1.msra.mxu0 0.0
    %1691 = vmatprep.subr.mxu0 0.0
    %1692 = vmatpush1.msra.mxu0 0.0
    %1693 = vmatprep.subr.mxu0 0.0
    %1694 = vmatpush1.msra.mxu0 0.0
    %1695 = vmatprep.subr.mxu0 0.0
    %1696 = vmatpush1.msra.mxu0 0.0
    %1697 = vmatprep.subr.mxu0 0.0
    %1698 = vmatpush1.msra.mxu0 0.0
    %1699 = vmatprep.subr.mxu0 0.0
    %1700 = vmatpush1.msra.mxu0 0.0
    %1701 = vmatprep.subr.mxu0 0.0
    %1702 = vmatpush1.msra.mxu0 0.0
    %1703 = vmatprep.subr.mxu0 0.0
    %1704 = vmatpush1.msra.mxu0 0.0
    %1705 = vmatprep.subr.mxu0 0.0
    %1706 = vmatpush1.msra.mxu0 0.0
    %1707 = vmatprep.subr.mxu0 0.0
    %1708 = vmatpush1.msra.mxu0 0.0
    %1709 = vmatprep.subr.mxu0 0.0
    %1710 = vmatpush1.msra.mxu0 0.0
    %1711 = vmatprep.subr.mxu0 0.0
    %1712 = vmatpush1.msra.mxu0 0.0
    %1713 = vmatprep.subr.mxu0 0.0
    %1714 = vmatpush1.msra.mxu0 0.0
    %1715 = vmatprep.subr.mxu0 %v1677
    %1716 = vmatpush1.msra.mxu0 %v1674
    %1717 = vmatprep.subr.mxu0 0.0
    %1718 = vmatpush2.msra.mxu0 0.0
    %1719 = vmatprep.subr.mxu0 0.0
    %1720 = vmatpush2.msra.mxu0 0.0
    %1721 = vmatprep.subr.mxu0 0.0
    %1722 = vmatpush2.msra.mxu0 0.0
    %1723 = vmatprep.subr.mxu0 0.0
    %1724 = vmatpush2.msra.mxu0 0.0
    %1725 = vmatprep.subr.mxu0 0.0
    %1726 = vmatpush2.msra.mxu0 0.0
    %1727 = vmatprep.subr.mxu0 0.0
    %1728 = vmatpush2.msra.mxu0 0.0
    %1729 = vmatprep.subr.mxu0 0.0
    %1730 = vmatpush2.msra.mxu0 0.0
    %1731 = vmatprep.subr.mxu0 0.0
    %1732 = vmatpush2.msra.mxu0 0.0
    %1733 = vmatprep.subr.mxu0 0.0
    %1734 = vmatpush2.msra.mxu0 0.0
    %1735 = vmatprep.subr.mxu0 0.0
    %1736 = vmatpush2.msra.mxu0 0.0
    %1737 = vmatprep.subr.mxu0 0.0
    %1738 = vmatpush2.msra.mxu0 0.0
    %1739 = vmatprep.subr.mxu0 0.0
    %1740 = vmatpush2.msra.mxu0 0.0
    %1741 = vmatprep.subr.mxu0 0.0
    %1742 = vmatpush2.msra.mxu0 0.0
    %1743 = vmatprep.subr.mxu0 0.0
    %1744 = vmatpush2.msra.mxu0 0.0
    %1745 = vmatprep.subr.mxu0 0.0
    %1746 = vmatpush2.msra.mxu0 0.0
    %1747 = vmatprep.subr.mxu0 0.0
    %1748 = vmatpush2.msra.mxu0 0.0
    %1749 = vmatprep.mubr.f32.mxu0 0.0
    %1750 = vmatmul.mubr.f32.gmra.mxu0 %v1671
    %v1751 = vpop.f32.mrf.mxu0
    %v1752 = vadd.f32 0.0, %v1751
    %v1753 = vpop.f32.mrf.mxu0
    %v1754 = vadd.f32 0.0, %v1753
    %1755 = vdwg.mxu0
    %1756 = vmatprep.subr.mxu0 0.0
    %1757 = vmatpush1.msra.mxu0 0.0
    %1758 = vmatprep.subr.mxu0 0.0
    %1759 = vmatpush1.msra.mxu0 0.0
    %1760 = vmatprep.subr.mxu0 0.0
    %1761 = vmatpush1.msra.mxu0 0.0
    %1762 = vmatprep.subr.mxu0 0.0
    %1763 = vmatpush1.msra.mxu0 0.0
    %1764 = vmatprep.subr.mxu0 0.0
    %1765 = vmatpush1.msra.mxu0 0.0
    %1766 = vmatprep.subr.mxu0 0.0
    %1767 = vmatpush1.msra.mxu0 0.0
    %1768 = vmatprep.subr.mxu0 0.0
    %1769 = vmatpush1.msra.mxu0 0.0
    %1770 = vmatprep.subr.mxu0 0.0
    %1771 = vmatpush1.msra.mxu0 0.0
    %1772 = vmatprep.subr.mxu0 0.0
    %1773 = vmatpush1.msra.mxu0 0.0
    %1774 = vmatprep.subr.mxu0 0.0
    %1775 = vmatpush1.msra.mxu0 0.0
    %1776 = vmatprep.subr.mxu0 0.0
    %1777 = vmatpush1.msra.mxu0 0.0
    %1778 = vmatprep.subr.mxu0 0.0
    %1779 = vmatpush1.msra.mxu0 0.0
    %1780 = vmatprep.subr.mxu0 0.0
    %1781 = vmatpush1.msra.mxu0 0.0
    %1782 = vmatprep.subr.mxu0 0.0
    %1783 = vmatpush1.msra.mxu0 0.0
    %1784 = vmatprep.subr.mxu0 0.0
    %1785 = vmatpush1.msra.mxu0 0.0
    %1786 = vmatprep.subr.mxu0 %v1683
    %1787 = vmatpush1.msra.mxu0 %v1680
    %1788 = vmatprep.subr.mxu0 0.0
    %1789 = vmatpush2.msra.mxu0 0.0
    %1790 = vmatprep.subr.mxu0 0.0
    %1791 = vmatpush2.msra.mxu0 0.0
    %1792 = vmatprep.subr.mxu0 0.0
    %1793 = vmatpush2.msra.mxu0 0.0
    %1794 = vmatprep.subr.mxu0 0.0
    %1795 = vmatpush2.msra.mxu0 0.0
    %1796 = vmatprep.subr.mxu0 0.0
    %1797 = vmatpush2.msra.mxu0 0.0
    %1798 = vmatprep.subr.mxu0 0.0
    %1799 = vmatpush2.msra.mxu0 0.0
    %1800 = vmatprep.subr.mxu0 0.0
    %1801 = vmatpush2.msra.mxu0 0.0
    %1802 = vmatprep.subr.mxu0 0.0
    %1803 = vmatpush2.msra.mxu0 0.0
    %1804 = vmatprep.subr.mxu0 0.0
    %1805 = vmatpush2.msra.mxu0 0.0
    %1806 = vmatprep.subr.mxu0 0.0
    %1807 = vmatpush2.msra.mxu0 0.0
    %1808 = vmatprep.subr.mxu0 0.0
    %1809 = vmatpush2.msra.mxu0 0.0
    %1810 = vmatprep.subr.mxu0 0.0
    %1811 = vmatpush2.msra.mxu0 0.0
    %1812 = vmatprep.subr.mxu0 0.0
    %1813 = vmatpush2.msra.mxu0 0.0
    %1814 = vmatprep.subr.mxu0 0.0
    %1815 = vmatpush2.msra.mxu0 0.0
    %1816 = vmatprep.subr.mxu0 0.0
    %1817 = vmatpush2.msra.mxu0 0.0
    %1818 = vmatprep.subr.mxu0 0.0
    %1819 = vmatpush2.msra.mxu0 0.0
    %1820 = vmatprep.mubr.f32.mxu0 0.0
    %1821 = vmatmul.mubr.f32.gmra.mxu0 %v1671
    %v1822 = vpop.f32.mrf.mxu0
    %v1823 = vadd.f32 0.0, %v1822
    %v1824 = vpop.f32.mrf.mxu0
    %v1825 = vadd.f32 0.0, %v1824
    %1826 = vdwg.mxu0
    %v1827 = vadd.f32 %v1625, %v1752
    %v1828 = vadd.f32 %v1626, %v1754
    %v1829 = vadd.f32 %v1627, %v1823
    %v1830 = vadd.f32 %v1628, %v1825
    %v1831 = vmax.f32 %v1827, 0.0
    %v1832 = vmax.f32 %v1828, 0.0
    %v1833 = vmax.f32 %v1829, 0.0
    %v1834 = vmax.f32 %v1830, 0.0
    %v1835 = vld [vmem:[#allocation4 + $0x20] sm:$0x6]
    %v1836 = vld [vmem:[#allocation4 + $0x28] sm:$0x6]
    %v1837 = vld [vmem:[#allocation4 + $0x30] sm:$0x6]
    %v1838 = vld [vmem:[#allocation4 + $0x38] sm:$0x6]
    %v1843 = vrot.slane %v1835, 1
    %v1844 = vrot.slane %v1836, 1
    %v1845 = vrot.slane %v1837, 1
    %v1846 = vrot.slane %v1838, 1
    %1851 = vmatprep.subr.mxu0 0.0
    %1852 = vmatpush1.xpose.msra.mxu0 0.0
    %1853 = vmatprep.subr.mxu0 0.0
    %1854 = vmatpush1.xpose.msra.mxu0 0.0
    %1855 = vmatprep.subr.mxu0 0.0
    %1856 = vmatpush1.xpose.msra.mxu0 0.0
    %1857 = vmatprep.subr.mxu0 0.0
    %1858 = vmatpush1.xpose.msra.mxu0 0.0
    %1859 = vmatprep.subr.mxu0 0.0
    %1860 = vmatpush1.xpose.msra.mxu0 0.0
    %1861 = vmatprep.subr.mxu0 0.0
    %1862 = vmatpush1.xpose.msra.mxu0 0.0
    %1863 = vmatprep.subr.mxu0 0.0
    %1864 = vmatpush1.xpose.msra.mxu0 0.0
    %1865 = vmatprep.subr.mxu0 0.0
    %1866 = vmatpush1.xpose.msra.mxu0 0.0
    %1867 = vmatprep.subr.mxu0 0.0
    %1868 = vmatpush1.xpose.msra.mxu0 0.0
    %1869 = vmatprep.subr.mxu0 0.0
    %1870 = vmatpush1.xpose.msra.mxu0 0.0
    %1871 = vmatprep.subr.mxu0 0.0
    %1872 = vmatpush1.xpose.msra.mxu0 0.0
    %1873 = vmatprep.subr.mxu0 0.0
    %1874 = vmatpush1.xpose.msra.mxu0 0.0
    %1875 = vmatprep.subr.mxu0 0.0
    %1876 = vmatpush1.xpose.msra.mxu0 0.0
    %1877 = vmatprep.subr.mxu0 0.0
    %1878 = vmatpush1.xpose.msra.mxu0 0.0
    %1879 = vmatprep.subr.mxu0 0.0
    %1880 = vmatpush1.xpose.msra.mxu0 0.0
    %1881 = vmatprep.subr.mxu0 %v1832
    %1882 = vmatpush1.xpose.msra.mxu0 %v1831
    %1883 = vmatprep.subr.mxu0 0.0
    %1884 = vmatpush2.xpose.msra.mxu0 0.0
    %1885 = vmatprep.subr.mxu0 0.0
    %1886 = vmatpush2.xpose.msra.mxu0 0.0
    %1887 = vmatprep.subr.mxu0 0.0
    %1888 = vmatpush2.xpose.msra.mxu0 0.0
    %1889 = vmatprep.subr.mxu0 0.0
    %1890 = vmatpush2.xpose.msra.mxu0 0.0
    %1891 = vmatprep.subr.mxu0 0.0
    %1892 = vmatpush2.xpose.msra.mxu0 0.0
    %1893 = vmatprep.subr.mxu0 0.0
    %1894 = vmatpush2.xpose.msra.mxu0 0.0
    %1895 = vmatprep.subr.mxu0 0.0
    %1896 = vmatpush2.xpose.msra.mxu0 0.0
    %1897 = vmatprep.subr.mxu0 0.0
    %1898 = vmatpush2.xpose.msra.mxu0 0.0
    %1899 = vmatprep.subr.mxu0 0.0
    %1900 = vmatpush2.xpose.msra.mxu0 0.0
    %1901 = vmatprep.subr.mxu0 0.0
    %1902 = vmatpush2.xpose.msra.mxu0 0.0
    %1903 = vmatprep.subr.mxu0 0.0
    %1904 = vmatpush2.xpose.msra.mxu0 0.0
    %1905 = vmatprep.subr.mxu0 0.0
    %1906 = vmatpush2.xpose.msra.mxu0 0.0
    %1907 = vmatprep.subr.mxu0 0.0
    %1908 = vmatpush2.xpose.msra.mxu0 0.0
    %1909 = vmatprep.subr.mxu0 0.0
    %1910 = vmatpush2.xpose.msra.mxu0 0.0
    %1911 = vmatprep.subr.mxu0 0.0
    %1912 = vmatpush2.xpose.msra.mxu0 0.0
    %1913 = vmatprep.subr.mxu0 0.0
    %1914 = vmatpush2.xpose.msra.mxu0 0.0
    %1915 = vmatprep.mubr.f32.mxu0 %v1844
    %1916 = vmatmul.mubr.f32.gmra.mxu0 %v1843
    %v1917 = vpop.f32.mrf.mxu0
    %v1918 = vadd.f32 0.0, %v1917
    %v1919 = vpop.f32.mrf.mxu0
    %1920 = vdwg.mxu0
    %1921 = vmatprep.subr.mxu0 0.0
    %1922 = vmatpush1.xpose.msra.mxu0 0.0
    %1923 = vmatprep.subr.mxu0 0.0
    %1924 = vmatpush1.xpose.msra.mxu0 0.0
    %1925 = vmatprep.subr.mxu0 0.0
    %1926 = vmatpush1.xpose.msra.mxu0 0.0
    %1927 = vmatprep.subr.mxu0 0.0
    %1928 = vmatpush1.xpose.msra.mxu0 0.0
    %1929 = vmatprep.subr.mxu0 0.0
    %1930 = vmatpush1.xpose.msra.mxu0 0.0
    %1931 = vmatprep.subr.mxu0 0.0
    %1932 = vmatpush1.xpose.msra.mxu0 0.0
    %1933 = vmatprep.subr.mxu0 0.0
    %1934 = vmatpush1.xpose.msra.mxu0 0.0
    %1935 = vmatprep.subr.mxu0 0.0
    %1936 = vmatpush1.xpose.msra.mxu0 0.0
    %1937 = vmatprep.subr.mxu0 0.0
    %1938 = vmatpush1.xpose.msra.mxu0 0.0
    %1939 = vmatprep.subr.mxu0 0.0
    %1940 = vmatpush1.xpose.msra.mxu0 0.0
    %1941 = vmatprep.subr.mxu0 0.0
    %1942 = vmatpush1.xpose.msra.mxu0 0.0
    %1943 = vmatprep.subr.mxu0 0.0
    %1944 = vmatpush1.xpose.msra.mxu0 0.0
    %1945 = vmatprep.subr.mxu0 0.0
    %1946 = vmatpush1.xpose.msra.mxu0 0.0
    %1947 = vmatprep.subr.mxu0 0.0
    %1948 = vmatpush1.xpose.msra.mxu0 0.0
    %1949 = vmatprep.subr.mxu0 0.0
    %1950 = vmatpush1.xpose.msra.mxu0 0.0
    %1951 = vmatprep.subr.mxu0 %v1834
    %1952 = vmatpush1.xpose.msra.mxu0 %v1833
    %1953 = vmatprep.subr.mxu0 0.0
    %1954 = vmatpush2.xpose.msra.mxu0 0.0
    %1955 = vmatprep.subr.mxu0 0.0
    %1956 = vmatpush2.xpose.msra.mxu0 0.0
    %1957 = vmatprep.subr.mxu0 0.0
    %1958 = vmatpush2.xpose.msra.mxu0 0.0
    %1959 = vmatprep.subr.mxu0 0.0
    %1960 = vmatpush2.xpose.msra.mxu0 0.0
    %1961 = vmatprep.subr.mxu0 0.0
    %1962 = vmatpush2.xpose.msra.mxu0 0.0
    %1963 = vmatprep.subr.mxu0 0.0
    %1964 = vmatpush2.xpose.msra.mxu0 0.0
    %1965 = vmatprep.subr.mxu0 0.0
    %1966 = vmatpush2.xpose.msra.mxu0 0.0
    %1967 = vmatprep.subr.mxu0 0.0
    %1968 = vmatpush2.xpose.msra.mxu0 0.0
    %1969 = vmatprep.subr.mxu0 0.0
    %1970 = vmatpush2.xpose.msra.mxu0 0.0
    %1971 = vmatprep.subr.mxu0 0.0
    %1972 = vmatpush2.xpose.msra.mxu0 0.0
    %1973 = vmatprep.subr.mxu0 0.0
    %1974 = vmatpush2.xpose.msra.mxu0 0.0
    %1975 = vmatprep.subr.mxu0 0.0
    %1976 = vmatpush2.xpose.msra.mxu0 0.0
    %1977 = vmatprep.subr.mxu0 0.0
    %1978 = vmatpush2.xpose.msra.mxu0 0.0
    %1979 = vmatprep.subr.mxu0 0.0
    %1980 = vmatpush2.xpose.msra.mxu0 0.0
    %1981 = vmatprep.subr.mxu0 0.0
    %1982 = vmatpush2.xpose.msra.mxu0 0.0
    %1983 = vmatprep.subr.mxu0 0.0
    %1984 = vmatpush2.xpose.msra.mxu0 0.0
    %1985 = vmatprep.mubr.f32.mxu0 %v1846
    %1986 = vmatmul.mubr.f32.gmra.mxu0 %v1845
    %v1987 = vpop.f32.mrf.mxu0
    %v1988 = vadd.f32 %v1918, %v1987
    %v1989 = vpop.f32.mrf.mxu0
    %1990 = vdwg.mxu0
    %v1991 = vld [vmem:[%s3 + $0x48] sm:$0xff]
    %v1992 = vld [vmem:[%s3 + $0x58] sm:$0x1]
    %v1993 = vlaneseq
    %v1994 = vshrl.u32 %v1993, 7
    %v1995 = vsub.s32 0, %v1994
    %v1996 = vrot.slane %v1992, %v1995
    %vm1997 = vcmask 64512
    %v1999 = vsel %vm1997, %v1988, 0
    %2001 = vmatprep.subr.mxu0 0.0
    %2002 = vmatpush1.msra.mxu0 0.0
    %2003 = vmatprep.subr.mxu0 0.0
    %2004 = vmatpush1.msra.mxu0 0.0
    %2005 = vmatprep.subr.mxu0 0.0
    %2006 = vmatpush1.msra.mxu0 0.0
    %2007 = vmatprep.subr.mxu0 0.0
    %2008 = vmatpush1.msra.mxu0 0.0
    %2009 = vmatprep.subr.mxu0 0.0
    %2010 = vmatpush1.msra.mxu0 0.0
    %2011 = vmatprep.subr.mxu0 0.0
    %2012 = vmatpush1.msra.mxu0 0.0
    %2013 = vmatprep.subr.mxu0 0.0
    %2014 = vmatpush1.msra.mxu0 0.0
    %2015 = vmatprep.subr.mxu0 0.0
    %2016 = vmatpush1.msra.mxu0 0.0
    %2017 = vmatprep.subr.mxu0 0.0
    %2018 = vmatpush1.msra.mxu0 0.0
    %2019 = vmatprep.subr.mxu0 0.0
    %2020 = vmatpush1.msra.mxu0 0.0
    %2021 = vmatprep.subr.mxu0 0.0
    %2022 = vmatpush1.msra.mxu0 0.0
    %2023 = vmatprep.subr.mxu0 0.0
    %2024 = vmatpush1.msra.mxu0 0.0
    %2025 = vmatprep.subr.mxu0 0.0
    %2026 = vmatpush1.msra.mxu0 0.0
    %2027 = vmatprep.subr.mxu0 0.0
    %2028 = vmatpush1.msra.mxu0 0.0
    %2029 = vmatprep.subr.mxu0 0.0
    %2030 = vmatpush1.msra.mxu0 0.0
    %2031 = vmatprep.subr.mxu0 0.0
    %2032 = vmatpush1.msra.mxu0 %v1991
    %2033 = vmatprep.subr.mxu0 0.0
    %2034 = vmatpush2.msra.mxu0 0.0
    %2035 = vmatprep.subr.mxu0 0.0
    %2036 = vmatpush2.msra.mxu0 0.0
    %2037 = vmatprep.subr.mxu0 0.0
    %2038 = vmatpush2.msra.mxu0 0.0
    %2039 = vmatprep.subr.mxu0 0.0
    %2040 = vmatpush2.msra.mxu0 0.0
    %2041 = vmatprep.subr.mxu0 0.0
    %2042 = vmatpush2.msra.mxu0 0.0
    %2043 = vmatprep.subr.mxu0 0.0
    %2044 = vmatpush2.msra.mxu0 0.0
    %2045 = vmatprep.subr.mxu0 0.0
    %2046 = vmatpush2.msra.mxu0 0.0
    %2047 = vmatprep.subr.mxu0 0.0
    %2048 = vmatpush2.msra.mxu0 0.0
    %2049 = vmatprep.subr.mxu0 0.0
    %2050 = vmatpush2.msra.mxu0 0.0
    %2051 = vmatprep.subr.mxu0 0.0
    %2052 = vmatpush2.msra.mxu0 0.0
    %2053 = vmatprep.subr.mxu0 0.0
    %2054 = vmatpush2.msra.mxu0 0.0
    %2055 = vmatprep.subr.mxu0 0.0
    %2056 = vmatpush2.msra.mxu0 0.0
    %2057 = vmatprep.subr.mxu0 0.0
    %2058 = vmatpush2.msra.mxu0 0.0
    %2059 = vmatprep.subr.mxu0 0.0
    %2060 = vmatpush2.msra.mxu0 0.0
    %2061 = vmatprep.subr.mxu0 0.0
    %2062 = vmatpush2.msra.mxu0 0.0
    %2063 = vmatprep.subr.mxu0 0.0
    %2064 = vmatpush2.msra.mxu0 0.0
    %2065 = vmatprep.mubr.f32.mxu0 0.0
    %2066 = vmatmul.mubr.f32.gmra.mxu0 %v1999
    %v2067 = vpop.f32.mrf.mxu0
    %v2068 = vadd.f32 %v1996, %v2067
    %v2069 = vpop.f32.mrf.mxu0
    %2070 = vdwg.mxu0
    %v2071 = vmul.f32 %v2068, %v2068
    %vm2072 = vcmask 254976
    %v2073 = vsel %vm2072, %v2071, 0.0
    %2074 = vadd.xlane.f32.xlu0 %v2073
    %v2075 = vpop.xlane.xlu0 %2074
    %v2076 = vadd.f32 %v2075, 1e-12
    %v2077 = vrsqrt.pop %v2076
    %v2078 = vmul.f32 %v2068, %v2077
    %v2079 = vld [vmem:[%s3 + $0x60] sm:$0xff]
    %v2080 = vld [vmem:[%s3 + $0x68] sm:$0xff]
    %v2081 = vld [vmem:[%s3 + $0x70] sm:$0xff]
    %v2082 = vld [vmem:[%s3 + $0x78] sm:$0xff]
    %vm2083 = vcmask 261120
    %v2085 = vsel %vm2083, %v2078, 0
    %2087 = vmatprep.subr.mxu0 0.0
    %2088 = vmatpush1.msra.mxu0 0.0
    %2089 = vmatprep.subr.mxu0 0.0
    %2090 = vmatpush1.msra.mxu0 0.0
    %2091 = vmatprep.subr.mxu0 0.0
    %2092 = vmatpush1.msra.mxu0 0.0
    %2093 = vmatprep.subr.mxu0 0.0
    %2094 = vmatpush1.msra.mxu0 0.0
    %2095 = vmatprep.subr.mxu0 0.0
    %2096 = vmatpush1.msra.mxu0 0.0
    %2097 = vmatprep.subr.mxu0 0.0
    %2098 = vmatpush1.msra.mxu0 0.0
    %2099 = vmatprep.subr.mxu0 0.0
    %2100 = vmatpush1.msra.mxu0 0.0
    %2101 = vmatprep.subr.mxu0 0.0
    %2102 = vmatpush1.msra.mxu0 0.0
    %2103 = vmatprep.subr.mxu0 0.0
    %2104 = vmatpush1.msra.mxu0 0.0
    %2105 = vmatprep.subr.mxu0 0.0
    %2106 = vmatpush1.msra.mxu0 0.0
    %2107 = vmatprep.subr.mxu0 0.0
    %2108 = vmatpush1.msra.mxu0 0.0
    %2109 = vmatprep.subr.mxu0 0.0
    %2110 = vmatpush1.msra.mxu0 0.0
    %2111 = vmatprep.subr.mxu0 0.0
    %2112 = vmatpush1.msra.mxu0 %v2082
    %2113 = vmatprep.subr.mxu0 0.0
    %2114 = vmatpush1.msra.mxu0 %v2081
    %2115 = vmatprep.subr.mxu0 0.0
    %2116 = vmatpush1.msra.mxu0 %v2080
    %2117 = vmatprep.subr.mxu0 0.0
    %2118 = vmatpush1.msra.mxu0 %v2079
    %2119 = vmatprep.subr.mxu0 0.0
    %2120 = vmatpush2.msra.mxu0 0.0
    %2121 = vmatprep.subr.mxu0 0.0
    %2122 = vmatpush2.msra.mxu0 0.0
    %2123 = vmatprep.subr.mxu0 0.0
    %2124 = vmatpush2.msra.mxu0 0.0
    %2125 = vmatprep.subr.mxu0 0.0
    %2126 = vmatpush2.msra.mxu0 0.0
    %2127 = vmatprep.subr.mxu0 0.0
    %2128 = vmatpush2.msra.mxu0 0.0
    %2129 = vmatprep.subr.mxu0 0.0
    %2130 = vmatpush2.msra.mxu0 0.0
    %2131 = vmatprep.subr.mxu0 0.0
    %2132 = vmatpush2.msra.mxu0 0.0
    %2133 = vmatprep.subr.mxu0 0.0
    %2134 = vmatpush2.msra.mxu0 0.0
    %2135 = vmatprep.subr.mxu0 0.0
    %2136 = vmatpush2.msra.mxu0 0.0
    %2137 = vmatprep.subr.mxu0 0.0
    %2138 = vmatpush2.msra.mxu0 0.0
    %2139 = vmatprep.subr.mxu0 0.0
    %2140 = vmatpush2.msra.mxu0 0.0
    %2141 = vmatprep.subr.mxu0 0.0
    %2142 = vmatpush2.msra.mxu0 0.0
    %2143 = vmatprep.subr.mxu0 0.0
    %2144 = vmatpush2.msra.mxu0 0.0
    %2145 = vmatprep.subr.mxu0 0.0
    %2146 = vmatpush2.msra.mxu0 0.0
    %2147 = vmatprep.subr.mxu0 0.0
    %2148 = vmatpush2.msra.mxu0 0.0
    %2149 = vmatprep.subr.mxu0 0.0
    %2150 = vmatpush2.msra.mxu0 0.0
    %2151 = vmatprep.mubr.f32.mxu0 0.0
    %2152 = vmatmul.mubr.f32.gmra.mxu0 %v2085
    %v2153 = vpop.f32.mrf.mxu0
    %v2154 = vadd.f32 0.0, %v2153
    %v2155 = vpop.f32.mrf.mxu0
    %2156 = vdwg.mxu0
    %v2157 = vlaneseq
    %v2158 = vshrl.u32 %v2157, 7
    %s2159 = sld [smem:[#allocation3]]
    %v2160 = vstv %s2159
    %vm2161 = vcmp.eq.s32.totalorder %v2158, 1
    %s2162 = sld [smem:[#allocation3 + $0x1]]
    %v2163 = vstv %s2162
    %v2164 = vsel %vm2161, %v2163, %v2160
    %vm2165 = vcmp.eq.s32.totalorder %v61, %v2164
    %v2166 = vsel %vm2165, 3.2, 0.0
    %v2167 = vmul.f32 %v2154, 16.0
    %v2168 = vsub.f32 %v2167, %v2166
    %vm2169 = vcmask 123904
    %2170 = vst.msk [vmem:[#allocation7] sm:$0x3] %vm2169, %v2168
    // Predicated region
    $region18: #{forward.1} parent=1 // pred_check
      _
    $region19: #{forward.1} parent=1 // pred_check_branch
      %2172 = sbr.rel (0) target = $region21
    $region20: #{forward.1} parent=1 // pred_region
      %s2174 = ssub.s32 32, 32
      %2175 = vsyncadd [#allocation6], %s2174
      %s2177 = sshll.u32 [#allocation7], 4
      %s2178 = int_to_ptr.vmem [resolvable:$true] %s2177
      %2180 = dma.vmem_to_hbm [thread:$0]  %s2178, 32, %s4, [#allocation6]
    $region21: #{forward.1} parent=1 // pred_fallthru
      _
    // Predicated region
    $region22: #{forward.1} parent=1 // pred_check
      _
    $region23: #{forward.1} parent=1 // pred_check_branch
      %2182 = sbr.rel (0) target = $region25
    $region24: #{forward.1} parent=1 // pred_region
      %2183 = dma.done [#allocation6], 32
    $region25: #{forward.1} parent=1 // pred_fallthru
      _
    %2184 = vsyncpa [#allocation5], 1
    %2185 = vsyncpa [#allocation6], 1

</llo_original>
